<compile_context>
chip_gen: v6e
topology: v6e:2x2x1
jax: 0.10.0
libtpu: 0.0.40
codegen_flags: <defaults>
</compile_context>

<pallas_src>
import functools
import math

import jax
import jax.numpy as jnp
from jax.experimental import pallas as pl
from jax.experimental.pallas import tpu as pltpu

NUM_HEADS = 8


def _align8(n):
    return ((n + 7) // 8) * 8


def _weight_slab_layout(Din, H, num_layers, num_heads):
    """Row layout of the packed bf16 matmul-weight slab (width = 4*H lanes).

    Every entry starts on an 8-sublane boundary so in-kernel static slices stay aligned.
    Returns ({name: (row_off, rows, cols)}, total_rows, width).
    """
    layout = {}
    off = 0

    def add(name, r, c):
        nonlocal off
        layout[name] = (off, r, c)
        off += _align8(r)

    for l in range(num_layers):
        add(f"w_ih{l}", Din if l == 0 else H, 4 * H)   # (din, 4H), gate cols [i|f|o|g]
        add(f"w_hh{l}", H, 4 * H)
    add("wq", H, H)            # q projection, 1/sqrt(dh) folded in
    add("wkv", H, 2 * H)       # [k | v] projection
    add("wo", H, H)            # attention out_proj
    add("w1", H, H // 2)       # fc layer 1
    add("w2", H // 2, 1)       # fc layer 2
    add("gT", num_heads, H)    # head-group indicator (prob broadcast), 0/1
    return layout, _align8(off), 4 * H


def _misc_slab_layout(H, num_layers):
    """f32 bias/misc slab (width 4*H): rows [lstm biases | attn biases | fc biases | g]."""
    g_row = _align8(num_layers + 2)        # f32 0/1 score indicator (H, heads) starts here
    rows = _align8(g_row + H)
    return rows, g_row


# --------------------------------------------------------------------------
# Fully fused forward kernel (grid=(1,), everything resident in VMEM).
# --------------------------------------------------------------------------
def _build_fused_kernel(B, T, Din, H, num_layers, num_heads, w_layout, g_row):
    f32 = jnp.float32
    H2, H3, H4, Hh = 2 * H, 3 * H, 4 * H, H // 2

    def kernel(x_ref, w_ref, b_ref, out_ref):
        def wload(name):
            off, r, cols = w_layout[name]
            return w_ref[off:off + r, 0:cols]                 # static slice -> bf16 VMEM load

        def mm(a, w):
            # f32 accumulation; lhs cast to weight dtype (bf16 -> single-pass MXU).
            return jnp.dot(a.astype(w.dtype), w, preferred_element_type=f32)

        # ---------------- stacked LSTM, layer-major; input projection hoisted -----------------
        inp_seq = x_ref[...]                                  # (T*B, Din) f32, t-major rows
        h_last = None
        for l in range(num_layers):
            w_ih = wload(f"w_ih{l}")
            w_hh = wload(f"w_hh{l}")
            bias = b_ref[l:l + 1, 0:H4]                       # (1,4H) = b_ih + b_hh, [i|f|o|g]
            # All T timesteps' input projection in ONE MXU push (off the recurrence chain).
            xproj = mm(inp_seq, w_ih) + bias                  # (T*B, 4H) f32

            h = jnp.zeros((B, H), f32)
            c = jnp.zeros((B, H), f32)
            h_bf = None
            hs = []
            for t in range(T):                                # T static -> unrolled
                gates = xproj[t * B:(t + 1) * B, :]           # (B, 4H) contiguous sublane slice
                if t > 0:                                     # h == 0 at t == 0: skip matmul
                    gates = gates + jnp.dot(h_bf, w_hh, preferred_element_type=f32)
                sg = jax.nn.sigmoid(gates[:, 0:H3])           # one EUP pass for i | f | o
                gg = jnp.tanh(gates[:, H3:H4])                # one EUP pass for g
                c = sg[:, H:H2] * c + sg[:, 0:H] * gg
                h = sg[:, H2:H3] * jnp.tanh(c)
                h_bf = h.astype(w_hh.dtype)                   # single bf16 cast, reused below
                hs.append(h_bf)
            # Inter-layer dropout = identity (eval). Stack hidden states t-major for next layer.
            inp_seq = jnp.concatenate(hs, axis=0)             # (T*B, H) bf16
            h_last = h                                        # f32 h_{T-1} of this layer

        seq_bf = inp_seq                                      # (T*B, H) final-layer hiddens
        last_lstm = h_last                                    # (B, H) == lstm_out[:, -1, :]

        # ---------------- multi-head self-attention, LAST query row only, batched over B ------
        # Only combined[:, -1, :] feeds the head and attention rows are independent, so
        # computing attention for the final query row only is exact.
        wq, wkv, wo, gT_bf = wload("wq"), wload("wkv"), wload("wo"), wload("gT")
        arow = num_layers
        bq = b_ref[arow:arow + 1, 0:H]
        bkv = b_ref[arow:arow + 1, H:H3]
        bo = b_ref[arow:arow + 1, H3:H4]
        g_f32 = b_ref[g_row:g_row + H, 0:num_heads]           # (H, heads) 0/1 indicator, f32

        q = mm(last_lstm, wq) + bq                            # (B, H); 1/sqrt(dh) folded in
        kv = mm(seq_bf, wkv) + bkv                            # (T*B, 2H)
        k, v = kv[:, 0:H], kv[:, H:H2]

        q_rows = jnp.tile(q, (T, 1))                          # (T*B, H): row t*B+b = q[b]
        # per-head scores: s[t*B+b, h] = sum_{d in head h} q[b,d] * k[t*B+b,d]  (f32 matmul)
        s = jnp.dot(k * q_rows, g_f32, preferred_element_type=f32)   # (T*B, heads)
        s = s.reshape(T, B, num_heads)
        s = s - jnp.max(s, axis=0, keepdims=True)             # softmax over the T keys
        e = jnp.exp(s)
        p = e * pl.reciprocal(jnp.sum(e, axis=0, keepdims=True), approx=True)
        # broadcast each head's probability across its dh lanes, then weight V and sum over T
        p_full = mm(p.reshape(T * B, num_heads), gT_bf)       # (T*B, H)
        ctx = jnp.sum((p_full * v).reshape(T, B, H), axis=0)  # (B, H) concat of head contexts
        attn_last = mm(ctx, wo) + bo                          # out_proj -> (B, H)

        # ---------------- residual + last timestep + FC head -----------------------------------
        combined = last_lstm + attn_last                      # (B, H)
        b1 = b_ref[arow + 1:arow + 2, 0:Hh]
        b2 = b_ref[arow + 1:arow + 2, Hh:Hh + 1]
        h1 = jnp.maximum(mm(combined, wload("w1")) + b1, 0.0)
        out_ref[...] = mm(h1, wload("w2")) + b2               # (B, 1)

    return kernel


def lstm_predictor_forward(params, x, *, num_layers, num_heads=NUM_HEADS):
    # x: (B, T, input_dim) — batch_first, same as the PyTorch module.
    w_slab, b_slab = params["w_slab"], params["b_slab"]
    B, T, Din = x.shape
    H = b_slab.shape[1] // 4

    w_layout, wrows, wwidth = _weight_slab_layout(Din, H, num_layers, num_heads)
    b_rows, g_row = _misc_slab_layout(H, num_layers)
    assert w_slab.shape == (wrows, wwidth), (w_slab.shape, (wrows, wwidth))
    assert b_slab.shape == (b_rows, 4 * H), (b_slab.shape, (b_rows, 4 * H))

    # t-major flattening so per-timestep slices inside the kernel are contiguous sublane slices.
    x_flat = jnp.transpose(x, (1, 0, 2)).reshape(T * B, Din)  # row t*B+b = x[b, t]

    kernel = _build_fused_kernel(B, T, Din, H, num_layers, num_heads, w_layout, g_row)

    return pl.pallas_call(
        kernel,
        out_shape=jax.ShapeDtypeStruct((B, 1), jnp.float32),
        grid=(1,),
        in_specs=[pl.BlockSpec(x_flat.shape, lambda i: (0, 0)),
                  pl.BlockSpec(w_slab.shape, lambda i: (0, 0)),
                  pl.BlockSpec(b_slab.shape, lambda i: (0, 0))],
        out_specs=pl.BlockSpec((B, 1), lambda i: (0, 0)),
        compiler_params=pltpu.CompilerParams(dimension_semantics=("arbitrary",)),
    )(x_flat, w_slab, b_slab)


# --------------------------------------------------------------------------
# Parameter construction (deterministic; PyTorch-equivalent layouts, pre-transposed,
# gate columns reordered to [i|f|o|g], q-scale folded in, packed into 2 slabs ONCE).
# --------------------------------------------------------------------------
def _reorder_ifog(wT, H):
    # columns in PyTorch gate order (i, f, g, o) -> kernel order (i, f, o, g)
    return jnp.concatenate([wT[..., 0:2 * H], wT[..., 3 * H:4 * H], wT[..., 2 * H:3 * H]], axis=-1)


def init_params(key, input_dim, hidden_dim, num_layers, num_heads=NUM_HEADS):
    H = hidden_dim
    Hh = H // 2
    dh = H // num_heads
    keys = iter(jax.random.split(key, 8 * num_layers + 32))
    u = lambda shape, s: jax.random.uniform(next(keys), shape, jnp.float32, -s, s)

    w_layout, wrows, wwidth = _weight_slab_layout(input_dim, H, num_layers, num_heads)
    b_rows, g_row = _misc_slab_layout(H, num_layers)
    w_slab = jnp.zeros((wrows, wwidth), jnp.float32)
    b_slab = jnp.zeros((b_rows, 4 * H), jnp.float32)

    def put_w(slab, name, arr):
        off, r, cols = w_layout[name]
        assert arr.shape == (r, cols), (name, arr.shape, (r, cols))
        return slab.at[off:off + r, 0:cols].set(arr)

    # ---- LSTM (stored transposed vs PyTorch; gate columns reordered; b_ih + b_hh summed) ----
    s = 1.0 / math.sqrt(H)
    for l in range(num_layers):
        din = input_dim if l == 0 else H
        w_ihT = _reorder_ifog(u((din, 4 * H), s), H)
        w_hhT = _reorder_ifog(u((H, 4 * H), s), H)
        bias = _reorder_ifog(u((1, 4 * H), s) + u((1, 4 * H), s), H)
        w_slab = put_w(w_slab, f"w_ih{l}", w_ihT)
        w_slab = put_w(w_slab, f"w_hh{l}", w_hhT)
        b_slab = b_slab.at[l, 0:4 * H].set(bias[0])

    # ---- MultiheadAttention (in_proj split into q / kv; 1/sqrt(dh) folded into Wq, bq) ----
    sa = 1.0 / math.sqrt(H)
    scale = 1.0 / math.sqrt(dh)
    wqT = u((H, H), sa) * scale
    bq = u((H,), sa) * scale
    wkvT = u((H, 2 * H), sa)
    bkv = u((2 * H,), sa)
    woT = u((H, H), sa)
    bo = u((H,), sa)

    # ---- FC head ----
    s1, s2 = 1.0 / math.sqrt(H), 1.0 / math.sqrt(Hh)
    w1T, b1 = u((H, Hh), s1), u((Hh,), s1)
    w2T, b2 = u((Hh, 1), s2), u((1,), s2)

    # ---- 0/1 head-group indicator matrices (exact in bf16 and f32) ----
    head_ids = jnp.arange(H, dtype=jnp.int32) // dh
    g = (head_ids[:, None] == jnp.arange(num_heads, dtype=jnp.int32)[None, :]).astype(jnp.float32)

    for name, arr in [("wq", wqT), ("wkv", wkvT), ("wo", woT), ("w1", w1T), ("w2", w2T), ("gT", g.T)]:
        w_slab = put_w(w_slab, name, arr)

    arow = num_layers
    b_slab = b_slab.at[arow, 0:H].set(bq)
    b_slab = b_slab.at[arow, H:3 * H].set(bkv)
    b_slab = b_slab.at[arow, 3 * H:4 * H].set(bo)
    b_slab = b_slab.at[arow + 1, 0:Hh].set(b1)
    b_slab = b_slab.at[arow + 1, Hh:Hh + 1].set(b2)
    b_slab = b_slab.at[g_row:g_row + H, 0:num_heads].set(g)     # f32 copy for the score matmul

    return {"w_slab": w_slab.astype(jnp.bfloat16),               # bf16 matmul-weight slab
            "b_slab": b_slab}                                    # f32 bias/misc slab


if __name__ == "__main__":
    B, T = 2, 8
    input_dim, hidden_dim, num_layers, dropout = 16, 32, 2, 0.1  # dropout: identity at inference

    key = jax.random.PRNGKey(0)
    kx, kp = jax.random.split(key)
    x = jax.random.normal(kx, (B, T, input_dim), dtype=jnp.float32)
    params = init_params(kp, input_dim, hidden_dim, num_layers)

    fwd = jax.jit(functools.partial(lstm_predictor_forward, num_layers=num_layers))
    out = fwd(params, x)
    jax.block_until_ready(out)
    assert out.shape == (B, 1), out.shape
    print("KERNEL_OK")
</pallas_src>

<mosaic_0001>
module attributes {stable_mosaic.version = 11 : i64} {
  func.func @kernel(%arg0: i32, %arg1: memref<16x16xf32, #tpu.memory_space<vmem>>, %arg2: memref<264x128xbf16, #tpu.memory_space<vmem>>, %arg3: memref<40x128xf32, #tpu.memory_space<vmem>>, %arg4: memref<2x1xf32, #tpu.memory_space<vmem>>) attributes {dimension_semantics = [#tpu.dimension_semantics<arbitrary>], iteration_bounds = array<i64: 1>, scalar_prefetch = 0 : i64, scratch_operands = 0 : i64, tpu.core_type = #tpu.core_type<tc>, window_params = [{pipeline_mode = #tpu.pipeline_mode<synchronous>, transform_indices = @transform_0, window_bounds = array<i64: 16, 16>}, {pipeline_mode = #tpu.pipeline_mode<synchronous>, transform_indices = @transform_1, window_bounds = array<i64: 264, 128>}, {pipeline_mode = #tpu.pipeline_mode<synchronous>, transform_indices = @transform_2, window_bounds = array<i64: 40, 128>}, {pipeline_mode = #tpu.pipeline_mode<synchronous>, transform_indices = @transform_3, window_bounds = array<i64: 2, 1>}]} {
    %c0 = arith.constant 0 : index
    %c0_0 = arith.constant 0 : index
    %0 = vector.load %arg1[%c0, %c0_0] : memref<16x16xf32, #tpu.memory_space<vmem>>, vector<16x16xf32>
    %c0_1 = arith.constant 0 : index
    %c0_2 = arith.constant 0 : index
    %1 = vector.load %arg2[%c0_1, %c0_2] : memref<264x128xbf16, #tpu.memory_space<vmem>>, vector<16x128xbf16>
    %c16 = arith.constant 16 : index
    %c0_3 = arith.constant 0 : index
    %2 = vector.load %arg2[%c16, %c0_3] : memref<264x128xbf16, #tpu.memory_space<vmem>>, vector<32x128xbf16>
    %c0_4 = arith.constant 0 : index
    %c0_5 = arith.constant 0 : index
    %3 = vector.load %arg3[%c0_4, %c0_5] : memref<40x128xf32, #tpu.memory_space<vmem>>, vector<1x128xf32>
    %4 = arith.truncf %0 : vector<16x16xf32> to vector<16x16xbf16>
    %cst = arith.constant dense<0.000000e+00> : vector<16x128xf32>
    %5 = tpu.matmul %4, %1, %cst {dimension_numbers = #tpu.dot_dimension_numbers<[1], [0], [0], [1], [0, 0, 1, 1], [], []>} : vector<16x16xbf16>, vector<16x128xbf16>, vector<16x128xf32> -> vector<16x128xf32>
    %6 = vector.broadcast %3 : vector<1x128xf32> to vector<16x128xf32>
    %7 = arith.addf %5, %6 : vector<16x128xf32>
    %cst_6 = arith.constant 0.000000e+00 : f32
    %8 = vector.broadcast %cst_6 : f32 to vector<2x32xf32>
    %9 = vector.extract_strided_slice %7 {offsets = [0, 0], sizes = [2, 128], strides = [1, 1]} : vector<16x128xf32> to vector<2x128xf32>
    %10 = vector.extract_strided_slice %9 {offsets = [0, 0], sizes = [2, 96], strides = [1, 1]} : vector<2x128xf32> to vector<2x96xf32>
    %11 = arith.negf %10 : vector<2x96xf32>
    %12 = math.exp %11 : vector<2x96xf32>
    %cst_7 = arith.constant 1.000000e+00 : f32
    %13 = vector.broadcast %cst_7 : f32 to vector<2x96xf32>
    %14 = arith.addf %13, %12 : vector<2x96xf32>
    %15 = arith.divf %13, %14 : vector<2x96xf32>
    %16 = vector.extract_strided_slice %9 {offsets = [0, 96], sizes = [2, 32], strides = [1, 1]} : vector<2x128xf32> to vector<2x32xf32>
    %17 = math.tanh %16 : vector<2x32xf32>
    %18 = vector.extract_strided_slice %15 {offsets = [0, 32], sizes = [2, 32], strides = [1, 1]} : vector<2x96xf32> to vector<2x32xf32>
    %19 = arith.mulf %18, %8 : vector<2x32xf32>
    %20 = vector.extract_strided_slice %15 {offsets = [0, 0], sizes = [2, 32], strides = [1, 1]} : vector<2x96xf32> to vector<2x32xf32>
    %21 = arith.mulf %20, %17 : vector<2x32xf32>
    %22 = arith.addf %19, %21 : vector<2x32xf32>
    %23 = vector.extract_strided_slice %15 {offsets = [0, 64], sizes = [2, 32], strides = [1, 1]} : vector<2x96xf32> to vector<2x32xf32>
    %24 = math.tanh %22 : vector<2x32xf32>
    %25 = arith.mulf %23, %24 : vector<2x32xf32>
    %26 = arith.truncf %25 : vector<2x32xf32> to vector<2x32xbf16>
    %27 = vector.extract_strided_slice %7 {offsets = [2, 0], sizes = [2, 128], strides = [1, 1]} : vector<16x128xf32> to vector<2x128xf32>
    %cst_8 = arith.constant dense<0.000000e+00> : vector<2x128xf32>
    %28 = tpu.matmul %26, %2, %cst_8 {dimension_numbers = #tpu.dot_dimension_numbers<[1], [0], [0], [1], [0, 0, 1, 1], [], []>} : vector<2x32xbf16>, vector<32x128xbf16>, vector<2x128xf32> -> vector<2x128xf32>
    %29 = arith.addf %27, %28 : vector<2x128xf32>
    %30 = vector.extract_strided_slice %29 {offsets = [0, 0], sizes = [2, 96], strides = [1, 1]} : vector<2x128xf32> to vector<2x96xf32>
    %31 = arith.negf %30 : vector<2x96xf32>
    %32 = math.exp %31 : vector<2x96xf32>
    %cst_9 = arith.constant 1.000000e+00 : f32
    %33 = vector.broadcast %cst_9 : f32 to vector<2x96xf32>
    %34 = arith.addf %33, %32 : vector<2x96xf32>
    %35 = arith.divf %33, %34 : vector<2x96xf32>
    %36 = vector.extract_strided_slice %29 {offsets = [0, 96], sizes = [2, 32], strides = [1, 1]} : vector<2x128xf32> to vector<2x32xf32>
    %37 = math.tanh %36 : vector<2x32xf32>
    %38 = vector.extract_strided_slice %35 {offsets = [0, 32], sizes = [2, 32], strides = [1, 1]} : vector<2x96xf32> to vector<2x32xf32>
    %39 = arith.mulf %38, %22 : vector<2x32xf32>
    %40 = vector.extract_strided_slice %35 {offsets = [0, 0], sizes = [2, 32], strides = [1, 1]} : vector<2x96xf32> to vector<2x32xf32>
    %41 = arith.mulf %40, %37 : vector<2x32xf32>
    %42 = arith.addf %39, %41 : vector<2x32xf32>
    %43 = vector.extract_strided_slice %35 {offsets = [0, 64], sizes = [2, 32], strides = [1, 1]} : vector<2x96xf32> to vector<2x32xf32>
    %44 = math.tanh %42 : vector<2x32xf32>
    %45 = arith.mulf %43, %44 : vector<2x32xf32>
    %46 = arith.truncf %45 : vector<2x32xf32> to vector<2x32xbf16>
    %47 = vector.extract_strided_slice %7 {offsets = [4, 0], sizes = [2, 128], strides = [1, 1]} : vector<16x128xf32> to vector<2x128xf32>
    %cst_10 = arith.constant dense<0.000000e+00> : vector<2x128xf32>
    %48 = tpu.matmul %46, %2, %cst_10 {dimension_numbers = #tpu.dot_dimension_numbers<[1], [0], [0], [1], [0, 0, 1, 1], [], []>} : vector<2x32xbf16>, vector<32x128xbf16>, vector<2x128xf32> -> vector<2x128xf32>
    %49 = arith.addf %47, %48 : vector<2x128xf32>
    %50 = vector.extract_strided_slice %49 {offsets = [0, 0], sizes = [2, 96], strides = [1, 1]} : vector<2x128xf32> to vector<2x96xf32>
    %51 = arith.negf %50 : vector<2x96xf32>
    %52 = math.exp %51 : vector<2x96xf32>
    %cst_11 = arith.constant 1.000000e+00 : f32
    %53 = vector.broadcast %cst_11 : f32 to vector<2x96xf32>
    %54 = arith.addf %53, %52 : vector<2x96xf32>
    %55 = arith.divf %53, %54 : vector<2x96xf32>
    %56 = vector.extract_strided_slice %49 {offsets = [0, 96], sizes = [2, 32], strides = [1, 1]} : vector<2x128xf32> to vector<2x32xf32>
    %57 = math.tanh %56 : vector<2x32xf32>
    %58 = vector.extract_strided_slice %55 {offsets = [0, 32], sizes = [2, 32], strides = [1, 1]} : vector<2x96xf32> to vector<2x32xf32>
    %59 = arith.mulf %58, %42 : vector<2x32xf32>
    %60 = vector.extract_strided_slice %55 {offsets = [0, 0], sizes = [2, 32], strides = [1, 1]} : vector<2x96xf32> to vector<2x32xf32>
    %61 = arith.mulf %60, %57 : vector<2x32xf32>
    %62 = arith.addf %59, %61 : vector<2x32xf32>
    %63 = vector.extract_strided_slice %55 {offsets = [0, 64], sizes = [2, 32], strides = [1, 1]} : vector<2x96xf32> to vector<2x32xf32>
    %64 = math.tanh %62 : vector<2x32xf32>
    %65 = arith.mulf %63, %64 : vector<2x32xf32>
    %66 = arith.truncf %65 : vector<2x32xf32> to vector<2x32xbf16>
    %67 = vector.extract_strided_slice %7 {offsets = [6, 0], sizes = [2, 128], strides = [1, 1]} : vector<16x128xf32> to vector<2x128xf32>
    %cst_12 = arith.constant dense<0.000000e+00> : vector<2x128xf32>
    %68 = tpu.matmul %66, %2, %cst_12 {dimension_numbers = #tpu.dot_dimension_numbers<[1], [0], [0], [1], [0, 0, 1, 1], [], []>} : vector<2x32xbf16>, vector<32x128xbf16>, vector<2x128xf32> -> vector<2x128xf32>
    %69 = arith.addf %67, %68 : vector<2x128xf32>
    %70 = vector.extract_strided_slice %69 {offsets = [0, 0], sizes = [2, 96], strides = [1, 1]} : vector<2x128xf32> to vector<2x96xf32>
    %71 = arith.negf %70 : vector<2x96xf32>
    %72 = math.exp %71 : vector<2x96xf32>
    %cst_13 = arith.constant 1.000000e+00 : f32
    %73 = vector.broadcast %cst_13 : f32 to vector<2x96xf32>
    %74 = arith.addf %73, %72 : vector<2x96xf32>
    %75 = arith.divf %73, %74 : vector<2x96xf32>
    %76 = vector.extract_strided_slice %69 {offsets = [0, 96], sizes = [2, 32], strides = [1, 1]} : vector<2x128xf32> to vector<2x32xf32>
    %77 = math.tanh %76 : vector<2x32xf32>
    %78 = vector.extract_strided_slice %75 {offsets = [0, 32], sizes = [2, 32], strides = [1, 1]} : vector<2x96xf32> to vector<2x32xf32>
    %79 = arith.mulf %78, %62 : vector<2x32xf32>
    %80 = vector.extract_strided_slice %75 {offsets = [0, 0], sizes = [2, 32], strides = [1, 1]} : vector<2x96xf32> to vector<2x32xf32>
    %81 = arith.mulf %80, %77 : vector<2x32xf32>
    %82 = arith.addf %79, %81 : vector<2x32xf32>
    %83 = vector.extract_strided_slice %75 {offsets = [0, 64], sizes = [2, 32], strides = [1, 1]} : vector<2x96xf32> to vector<2x32xf32>
    %84 = math.tanh %82 : vector<2x32xf32>
    %85 = arith.mulf %83, %84 : vector<2x32xf32>
    %86 = arith.truncf %85 : vector<2x32xf32> to vector<2x32xbf16>
    %87 = vector.extract_strided_slice %7 {offsets = [8, 0], sizes = [2, 128], strides = [1, 1]} : vector<16x128xf32> to vector<2x128xf32>
    %cst_14 = arith.constant dense<0.000000e+00> : vector<2x128xf32>
    %88 = tpu.matmul %86, %2, %cst_14 {dimension_numbers = #tpu.dot_dimension_numbers<[1], [0], [0], [1], [0, 0, 1, 1], [], []>} : vector<2x32xbf16>, vector<32x128xbf16>, vector<2x128xf32> -> vector<2x128xf32>
    %89 = arith.addf %87, %88 : vector<2x128xf32>
    %90 = vector.extract_strided_slice %89 {offsets = [0, 0], sizes = [2, 96], strides = [1, 1]} : vector<2x128xf32> to vector<2x96xf32>
    %91 = arith.negf %90 : vector<2x96xf32>
    %92 = math.exp %91 : vector<2x96xf32>
    %cst_15 = arith.constant 1.000000e+00 : f32
    %93 = vector.broadcast %cst_15 : f32 to vector<2x96xf32>
    %94 = arith.addf %93, %92 : vector<2x96xf32>
    %95 = arith.divf %93, %94 : vector<2x96xf32>
    %96 = vector.extract_strided_slice %89 {offsets = [0, 96], sizes = [2, 32], strides = [1, 1]} : vector<2x128xf32> to vector<2x32xf32>
    %97 = math.tanh %96 : vector<2x32xf32>
    %98 = vector.extract_strided_slice %95 {offsets = [0, 32], sizes = [2, 32], strides = [1, 1]} : vector<2x96xf32> to vector<2x32xf32>
    %99 = arith.mulf %98, %82 : vector<2x32xf32>
    %100 = vector.extract_strided_slice %95 {offsets = [0, 0], sizes = [2, 32], strides = [1, 1]} : vector<2x96xf32> to vector<2x32xf32>
    %101 = arith.mulf %100, %97 : vector<2x32xf32>
    %102 = arith.addf %99, %101 : vector<2x32xf32>
    %103 = vector.extract_strided_slice %95 {offsets = [0, 64], sizes = [2, 32], strides = [1, 1]} : vector<2x96xf32> to vector<2x32xf32>
    %104 = math.tanh %102 : vector<2x32xf32>
    %105 = arith.mulf %103, %104 : vector<2x32xf32>
    %106 = arith.truncf %105 : vector<2x32xf32> to vector<2x32xbf16>
    %107 = vector.extract_strided_slice %7 {offsets = [10, 0], sizes = [2, 128], strides = [1, 1]} : vector<16x128xf32> to vector<2x128xf32>
    %cst_16 = arith.constant dense<0.000000e+00> : vector<2x128xf32>
    %108 = tpu.matmul %106, %2, %cst_16 {dimension_numbers = #tpu.dot_dimension_numbers<[1], [0], [0], [1], [0, 0, 1, 1], [], []>} : vector<2x32xbf16>, vector<32x128xbf16>, vector<2x128xf32> -> vector<2x128xf32>
    %109 = arith.addf %107, %108 : vector<2x128xf32>
    %110 = vector.extract_strided_slice %109 {offsets = [0, 0], sizes = [2, 96], strides = [1, 1]} : vector<2x128xf32> to vector<2x96xf32>
    %111 = arith.negf %110 : vector<2x96xf32>
    %112 = math.exp %111 : vector<2x96xf32>
    %cst_17 = arith.constant 1.000000e+00 : f32
    %113 = vector.broadcast %cst_17 : f32 to vector<2x96xf32>
    %114 = arith.addf %113, %112 : vector<2x96xf32>
    %115 = arith.divf %113, %114 : vector<2x96xf32>
    %116 = vector.extract_strided_slice %109 {offsets = [0, 96], sizes = [2, 32], strides = [1, 1]} : vector<2x128xf32> to vector<2x32xf32>
    %117 = math.tanh %116 : vector<2x32xf32>
    %118 = vector.extract_strided_slice %115 {offsets = [0, 32], sizes = [2, 32], strides = [1, 1]} : vector<2x96xf32> to vector<2x32xf32>
    %119 = arith.mulf %118, %102 : vector<2x32xf32>
    %120 = vector.extract_strided_slice %115 {offsets = [0, 0], sizes = [2, 32], strides = [1, 1]} : vector<2x96xf32> to vector<2x32xf32>
    %121 = arith.mulf %120, %117 : vector<2x32xf32>
    %122 = arith.addf %119, %121 : vector<2x32xf32>
    %123 = vector.extract_strided_slice %115 {offsets = [0, 64], sizes = [2, 32], strides = [1, 1]} : vector<2x96xf32> to vector<2x32xf32>
    %124 = math.tanh %122 : vector<2x32xf32>
    %125 = arith.mulf %123, %124 : vector<2x32xf32>
    %126 = arith.truncf %125 : vector<2x32xf32> to vector<2x32xbf16>
    %127 = vector.extract_strided_slice %7 {offsets = [12, 0], sizes = [2, 128], strides = [1, 1]} : vector<16x128xf32> to vector<2x128xf32>
    %cst_18 = arith.constant dense<0.000000e+00> : vector<2x128xf32>
    %128 = tpu.matmul %126, %2, %cst_18 {dimension_numbers = #tpu.dot_dimension_numbers<[1], [0], [0], [1], [0, 0, 1, 1], [], []>} : vector<2x32xbf16>, vector<32x128xbf16>, vector<2x128xf32> -> vector<2x128xf32>
    %129 = arith.addf %127, %128 : vector<2x128xf32>
    %130 = vector.extract_strided_slice %129 {offsets = [0, 0], sizes = [2, 96], strides = [1, 1]} : vector<2x128xf32> to vector<2x96xf32>
    %131 = arith.negf %130 : vector<2x96xf32>
    %132 = math.exp %131 : vector<2x96xf32>
    %cst_19 = arith.constant 1.000000e+00 : f32
    %133 = vector.broadcast %cst_19 : f32 to vector<2x96xf32>
    %134 = arith.addf %133, %132 : vector<2x96xf32>
    %135 = arith.divf %133, %134 : vector<2x96xf32>
    %136 = vector.extract_strided_slice %129 {offsets = [0, 96], sizes = [2, 32], strides = [1, 1]} : vector<2x128xf32> to vector<2x32xf32>
    %137 = math.tanh %136 : vector<2x32xf32>
    %138 = vector.extract_strided_slice %135 {offsets = [0, 32], sizes = [2, 32], strides = [1, 1]} : vector<2x96xf32> to vector<2x32xf32>
    %139 = arith.mulf %138, %122 : vector<2x32xf32>
    %140 = vector.extract_strided_slice %135 {offsets = [0, 0], sizes = [2, 32], strides = [1, 1]} : vector<2x96xf32> to vector<2x32xf32>
    %141 = arith.mulf %140, %137 : vector<2x32xf32>
    %142 = arith.addf %139, %141 : vector<2x32xf32>
    %143 = vector.extract_strided_slice %135 {offsets = [0, 64], sizes = [2, 32], strides = [1, 1]} : vector<2x96xf32> to vector<2x32xf32>
    %144 = math.tanh %142 : vector<2x32xf32>
    %145 = arith.mulf %143, %144 : vector<2x32xf32>
    %146 = arith.truncf %145 : vector<2x32xf32> to vector<2x32xbf16>
    %147 = vector.extract_strided_slice %7 {offsets = [14, 0], sizes = [2, 128], strides = [1, 1]} : vector<16x128xf32> to vector<2x128xf32>
    %cst_20 = arith.constant dense<0.000000e+00> : vector<2x128xf32>
    %148 = tpu.matmul %146, %2, %cst_20 {dimension_numbers = #tpu.dot_dimension_numbers<[1], [0], [0], [1], [0, 0, 1, 1], [], []>} : vector<2x32xbf16>, vector<32x128xbf16>, vector<2x128xf32> -> vector<2x128xf32>
    %149 = arith.addf %147, %148 : vector<2x128xf32>
    %150 = vector.extract_strided_slice %149 {offsets = [0, 0], sizes = [2, 96], strides = [1, 1]} : vector<2x128xf32> to vector<2x96xf32>
    %151 = arith.negf %150 : vector<2x96xf32>
    %152 = math.exp %151 : vector<2x96xf32>
    %cst_21 = arith.constant 1.000000e+00 : f32
    %153 = vector.broadcast %cst_21 : f32 to vector<2x96xf32>
    %154 = arith.addf %153, %152 : vector<2x96xf32>
    %155 = arith.divf %153, %154 : vector<2x96xf32>
    %156 = vector.extract_strided_slice %149 {offsets = [0, 96], sizes = [2, 32], strides = [1, 1]} : vector<2x128xf32> to vector<2x32xf32>
    %157 = math.tanh %156 : vector<2x32xf32>
    %158 = vector.extract_strided_slice %155 {offsets = [0, 32], sizes = [2, 32], strides = [1, 1]} : vector<2x96xf32> to vector<2x32xf32>
    %159 = arith.mulf %158, %142 : vector<2x32xf32>
    %160 = vector.extract_strided_slice %155 {offsets = [0, 0], sizes = [2, 32], strides = [1, 1]} : vector<2x96xf32> to vector<2x32xf32>
    %161 = arith.mulf %160, %157 : vector<2x32xf32>
    %162 = arith.addf %159, %161 : vector<2x32xf32>
    %163 = vector.extract_strided_slice %155 {offsets = [0, 64], sizes = [2, 32], strides = [1, 1]} : vector<2x96xf32> to vector<2x32xf32>
    %164 = math.tanh %162 : vector<2x32xf32>
    %165 = arith.mulf %163, %164 : vector<2x32xf32>
    %166 = arith.truncf %165 : vector<2x32xf32> to vector<2x32xbf16>
    %167 = tpu.concatenate %26, %46, %66, %86, %106, %126, %146, %166 in 0 : vector<2x32xbf16>, vector<2x32xbf16>, vector<2x32xbf16>, vector<2x32xbf16>, vector<2x32xbf16>, vector<2x32xbf16>, vector<2x32xbf16>, vector<2x32xbf16> -> vector<16x32xbf16>
    %c48 = arith.constant 48 : index
    %c0_22 = arith.constant 0 : index
    %168 = vector.load %arg2[%c48, %c0_22] : memref<264x128xbf16, #tpu.memory_space<vmem>>, vector<32x128xbf16>
    %c80 = arith.constant 80 : index
    %c0_23 = arith.constant 0 : index
    %169 = vector.load %arg2[%c80, %c0_23] : memref<264x128xbf16, #tpu.memory_space<vmem>>, vector<32x128xbf16>
    %c1 = arith.constant 1 : index
    %c0_24 = arith.constant 0 : index
    %170 = vector.load %arg3[%c1, %c0_24] : memref<40x128xf32, #tpu.memory_space<vmem>>, vector<1x128xf32>
    %cst_25 = arith.constant dense<0.000000e+00> : vector<16x128xf32>
    %171 = tpu.matmul %167, %168, %cst_25 {dimension_numbers = #tpu.dot_dimension_numbers<[1], [0], [0], [1], [0, 0, 1, 1], [], []>} : vector<16x32xbf16>, vector<32x128xbf16>, vector<16x128xf32> -> vector<16x128xf32>
    %172 = vector.broadcast %170 : vector<1x128xf32> to vector<16x128xf32>
    %173 = arith.addf %171, %172 : vector<16x128xf32>
    %cst_26 = arith.constant 0.000000e+00 : f32
    %174 = vector.broadcast %cst_26 : f32 to vector<2x32xf32>
    %175 = vector.extract_strided_slice %173 {offsets = [0, 0], sizes = [2, 128], strides = [1, 1]} : vector<16x128xf32> to vector<2x128xf32>
    %176 = vector.extract_strided_slice %175 {offsets = [0, 0], sizes = [2, 96], strides = [1, 1]} : vector<2x128xf32> to vector<2x96xf32>
    %177 = arith.negf %176 : vector<2x96xf32>
    %178 = math.exp %177 : vector<2x96xf32>
    %cst_27 = arith.constant 1.000000e+00 : f32
    %179 = vector.broadcast %cst_27 : f32 to vector<2x96xf32>
    %180 = arith.addf %179, %178 : vector<2x96xf32>
    %181 = arith.divf %179, %180 : vector<2x96xf32>
    %182 = vector.extract_strided_slice %175 {offsets = [0, 96], sizes = [2, 32], strides = [1, 1]} : vector<2x128xf32> to vector<2x32xf32>
    %183 = math.tanh %182 : vector<2x32xf32>
    %184 = vector.extract_strided_slice %181 {offsets = [0, 32], sizes = [2, 32], strides = [1, 1]} : vector<2x96xf32> to vector<2x32xf32>
    %185 = arith.mulf %184, %174 : vector<2x32xf32>
    %186 = vector.extract_strided_slice %181 {offsets = [0, 0], sizes = [2, 32], strides = [1, 1]} : vector<2x96xf32> to vector<2x32xf32>
    %187 = arith.mulf %186, %183 : vector<2x32xf32>
    %188 = arith.addf %185, %187 : vector<2x32xf32>
    %189 = vector.extract_strided_slice %181 {offsets = [0, 64], sizes = [2, 32], strides = [1, 1]} : vector<2x96xf32> to vector<2x32xf32>
    %190 = math.tanh %188 : vector<2x32xf32>
    %191 = arith.mulf %189, %190 : vector<2x32xf32>
    %192 = arith.truncf %191 : vector<2x32xf32> to vector<2x32xbf16>
    %193 = vector.extract_strided_slice %173 {offsets = [2, 0], sizes = [2, 128], strides = [1, 1]} : vector<16x128xf32> to vector<2x128xf32>
    %cst_28 = arith.constant dense<0.000000e+00> : vector<2x128xf32>
    %194 = tpu.matmul %192, %169, %cst_28 {dimension_numbers = #tpu.dot_dimension_numbers<[1], [0], [0], [1], [0, 0, 1, 1], [], []>} : vector<2x32xbf16>, vector<32x128xbf16>, vector<2x128xf32> -> vector<2x128xf32>
    %195 = arith.addf %193, %194 : vector<2x128xf32>
    %196 = vector.extract_strided_slice %195 {offsets = [0, 0], sizes = [2, 96], strides = [1, 1]} : vector<2x128xf32> to vector<2x96xf32>
    %197 = arith.negf %196 : vector<2x96xf32>
    %198 = math.exp %197 : vector<2x96xf32>
    %cst_29 = arith.constant 1.000000e+00 : f32
    %199 = vector.broadcast %cst_29 : f32 to vector<2x96xf32>
    %200 = arith.addf %199, %198 : vector<2x96xf32>
    %201 = arith.divf %199, %200 : vector<2x96xf32>
    %202 = vector.extract_strided_slice %195 {offsets = [0, 96], sizes = [2, 32], strides = [1, 1]} : vector<2x128xf32> to vector<2x32xf32>
    %203 = math.tanh %202 : vector<2x32xf32>
    %204 = vector.extract_strided_slice %201 {offsets = [0, 32], sizes = [2, 32], strides = [1, 1]} : vector<2x96xf32> to vector<2x32xf32>
    %205 = arith.mulf %204, %188 : vector<2x32xf32>
    %206 = vector.extract_strided_slice %201 {offsets = [0, 0], sizes = [2, 32], strides = [1, 1]} : vector<2x96xf32> to vector<2x32xf32>
    %207 = arith.mulf %206, %203 : vector<2x32xf32>
    %208 = arith.addf %205, %207 : vector<2x32xf32>
    %209 = vector.extract_strided_slice %201 {offsets = [0, 64], sizes = [2, 32], strides = [1, 1]} : vector<2x96xf32> to vector<2x32xf32>
    %210 = math.tanh %208 : vector<2x32xf32>
    %211 = arith.mulf %209, %210 : vector<2x32xf32>
    %212 = arith.truncf %211 : vector<2x32xf32> to vector<2x32xbf16>
    %213 = vector.extract_strided_slice %173 {offsets = [4, 0], sizes = [2, 128], strides = [1, 1]} : vector<16x128xf32> to vector<2x128xf32>
    %cst_30 = arith.constant dense<0.000000e+00> : vector<2x128xf32>
    %214 = tpu.matmul %212, %169, %cst_30 {dimension_numbers = #tpu.dot_dimension_numbers<[1], [0], [0], [1], [0, 0, 1, 1], [], []>} : vector<2x32xbf16>, vector<32x128xbf16>, vector<2x128xf32> -> vector<2x128xf32>
    %215 = arith.addf %213, %214 : vector<2x128xf32>
    %216 = vector.extract_strided_slice %215 {offsets = [0, 0], sizes = [2, 96], strides = [1, 1]} : vector<2x128xf32> to vector<2x96xf32>
    %217 = arith.negf %216 : vector<2x96xf32>
    %218 = math.exp %217 : vector<2x96xf32>
    %cst_31 = arith.constant 1.000000e+00 : f32
    %219 = vector.broadcast %cst_31 : f32 to vector<2x96xf32>
    %220 = arith.addf %219, %218 : vector<2x96xf32>
    %221 = arith.divf %219, %220 : vector<2x96xf32>
    %222 = vector.extract_strided_slice %215 {offsets = [0, 96], sizes = [2, 32], strides = [1, 1]} : vector<2x128xf32> to vector<2x32xf32>
    %223 = math.tanh %222 : vector<2x32xf32>
    %224 = vector.extract_strided_slice %221 {offsets = [0, 32], sizes = [2, 32], strides = [1, 1]} : vector<2x96xf32> to vector<2x32xf32>
    %225 = arith.mulf %224, %208 : vector<2x32xf32>
    %226 = vector.extract_strided_slice %221 {offsets = [0, 0], sizes = [2, 32], strides = [1, 1]} : vector<2x96xf32> to vector<2x32xf32>
    %227 = arith.mulf %226, %223 : vector<2x32xf32>
    %228 = arith.addf %225, %227 : vector<2x32xf32>
    %229 = vector.extract_strided_slice %221 {offsets = [0, 64], sizes = [2, 32], strides = [1, 1]} : vector<2x96xf32> to vector<2x32xf32>
    %230 = math.tanh %228 : vector<2x32xf32>
    %231 = arith.mulf %229, %230 : vector<2x32xf32>
    %232 = arith.truncf %231 : vector<2x32xf32> to vector<2x32xbf16>
    %233 = vector.extract_strided_slice %173 {offsets = [6, 0], sizes = [2, 128], strides = [1, 1]} : vector<16x128xf32> to vector<2x128xf32>
    %cst_32 = arith.constant dense<0.000000e+00> : vector<2x128xf32>
    %234 = tpu.matmul %232, %169, %cst_32 {dimension_numbers = #tpu.dot_dimension_numbers<[1], [0], [0], [1], [0, 0, 1, 1], [], []>} : vector<2x32xbf16>, vector<32x128xbf16>, vector<2x128xf32> -> vector<2x128xf32>
    %235 = arith.addf %233, %234 : vector<2x128xf32>
    %236 = vector.extract_strided_slice %235 {offsets = [0, 0], sizes = [2, 96], strides = [1, 1]} : vector<2x128xf32> to vector<2x96xf32>
    %237 = arith.negf %236 : vector<2x96xf32>
    %238 = math.exp %237 : vector<2x96xf32>
    %cst_33 = arith.constant 1.000000e+00 : f32
    %239 = vector.broadcast %cst_33 : f32 to vector<2x96xf32>
    %240 = arith.addf %239, %238 : vector<2x96xf32>
    %241 = arith.divf %239, %240 : vector<2x96xf32>
    %242 = vector.extract_strided_slice %235 {offsets = [0, 96], sizes = [2, 32], strides = [1, 1]} : vector<2x128xf32> to vector<2x32xf32>
    %243 = math.tanh %242 : vector<2x32xf32>
    %244 = vector.extract_strided_slice %241 {offsets = [0, 32], sizes = [2, 32], strides = [1, 1]} : vector<2x96xf32> to vector<2x32xf32>
    %245 = arith.mulf %244, %228 : vector<2x32xf32>
    %246 = vector.extract_strided_slice %241 {offsets = [0, 0], sizes = [2, 32], strides = [1, 1]} : vector<2x96xf32> to vector<2x32xf32>
    %247 = arith.mulf %246, %243 : vector<2x32xf32>
    %248 = arith.addf %245, %247 : vector<2x32xf32>
    %249 = vector.extract_strided_slice %241 {offsets = [0, 64], sizes = [2, 32], strides = [1, 1]} : vector<2x96xf32> to vector<2x32xf32>
    %250 = math.tanh %248 : vector<2x32xf32>
    %251 = arith.mulf %249, %250 : vector<2x32xf32>
    %252 = arith.truncf %251 : vector<2x32xf32> to vector<2x32xbf16>
    %253 = vector.extract_strided_slice %173 {offsets = [8, 0], sizes = [2, 128], strides = [1, 1]} : vector<16x128xf32> to vector<2x128xf32>
    %cst_34 = arith.constant dense<0.000000e+00> : vector<2x128xf32>
    %254 = tpu.matmul %252, %169, %cst_34 {dimension_numbers = #tpu.dot_dimension_numbers<[1], [0], [0], [1], [0, 0, 1, 1], [], []>} : vector<2x32xbf16>, vector<32x128xbf16>, vector<2x128xf32> -> vector<2x128xf32>
    %255 = arith.addf %253, %254 : vector<2x128xf32>
    %256 = vector.extract_strided_slice %255 {offsets = [0, 0], sizes = [2, 96], strides = [1, 1]} : vector<2x128xf32> to vector<2x96xf32>
    %257 = arith.negf %256 : vector<2x96xf32>
    %258 = math.exp %257 : vector<2x96xf32>
    %cst_35 = arith.constant 1.000000e+00 : f32
    %259 = vector.broadcast %cst_35 : f32 to vector<2x96xf32>
    %260 = arith.addf %259, %258 : vector<2x96xf32>
    %261 = arith.divf %259, %260 : vector<2x96xf32>
    %262 = vector.extract_strided_slice %255 {offsets = [0, 96], sizes = [2, 32], strides = [1, 1]} : vector<2x128xf32> to vector<2x32xf32>
    %263 = math.tanh %262 : vector<2x32xf32>
    %264 = vector.extract_strided_slice %261 {offsets = [0, 32], sizes = [2, 32], strides = [1, 1]} : vector<2x96xf32> to vector<2x32xf32>
    %265 = arith.mulf %264, %248 : vector<2x32xf32>
    %266 = vector.extract_strided_slice %261 {offsets = [0, 0], sizes = [2, 32], strides = [1, 1]} : vector<2x96xf32> to vector<2x32xf32>
    %267 = arith.mulf %266, %263 : vector<2x32xf32>
    %268 = arith.addf %265, %267 : vector<2x32xf32>
    %269 = vector.extract_strided_slice %261 {offsets = [0, 64], sizes = [2, 32], strides = [1, 1]} : vector<2x96xf32> to vector<2x32xf32>
    %270 = math.tanh %268 : vector<2x32xf32>
    %271 = arith.mulf %269, %270 : vector<2x32xf32>
    %272 = arith.truncf %271 : vector<2x32xf32> to vector<2x32xbf16>
    %273 = vector.extract_strided_slice %173 {offsets = [10, 0], sizes = [2, 128], strides = [1, 1]} : vector<16x128xf32> to vector<2x128xf32>
    %cst_36 = arith.constant dense<0.000000e+00> : vector<2x128xf32>
    %274 = tpu.matmul %272, %169, %cst_36 {dimension_numbers = #tpu.dot_dimension_numbers<[1], [0], [0], [1], [0, 0, 1, 1], [], []>} : vector<2x32xbf16>, vector<32x128xbf16>, vector<2x128xf32> -> vector<2x128xf32>
    %275 = arith.addf %273, %274 : vector<2x128xf32>
    %276 = vector.extract_strided_slice %275 {offsets = [0, 0], sizes = [2, 96], strides = [1, 1]} : vector<2x128xf32> to vector<2x96xf32>
    %277 = arith.negf %276 : vector<2x96xf32>
    %278 = math.exp %277 : vector<2x96xf32>
    %cst_37 = arith.constant 1.000000e+00 : f32
    %279 = vector.broadcast %cst_37 : f32 to vector<2x96xf32>
    %280 = arith.addf %279, %278 : vector<2x96xf32>
    %281 = arith.divf %279, %280 : vector<2x96xf32>
    %282 = vector.extract_strided_slice %275 {offsets = [0, 96], sizes = [2, 32], strides = [1, 1]} : vector<2x128xf32> to vector<2x32xf32>
    %283 = math.tanh %282 : vector<2x32xf32>
    %284 = vector.extract_strided_slice %281 {offsets = [0, 32], sizes = [2, 32], strides = [1, 1]} : vector<2x96xf32> to vector<2x32xf32>
    %285 = arith.mulf %284, %268 : vector<2x32xf32>
    %286 = vector.extract_strided_slice %281 {offsets = [0, 0], sizes = [2, 32], strides = [1, 1]} : vector<2x96xf32> to vector<2x32xf32>
    %287 = arith.mulf %286, %283 : vector<2x32xf32>
    %288 = arith.addf %285, %287 : vector<2x32xf32>
    %289 = vector.extract_strided_slice %281 {offsets = [0, 64], sizes = [2, 32], strides = [1, 1]} : vector<2x96xf32> to vector<2x32xf32>
    %290 = math.tanh %288 : vector<2x32xf32>
    %291 = arith.mulf %289, %290 : vector<2x32xf32>
    %292 = arith.truncf %291 : vector<2x32xf32> to vector<2x32xbf16>
    %293 = vector.extract_strided_slice %173 {offsets = [12, 0], sizes = [2, 128], strides = [1, 1]} : vector<16x128xf32> to vector<2x128xf32>
    %cst_38 = arith.constant dense<0.000000e+00> : vector<2x128xf32>
    %294 = tpu.matmul %292, %169, %cst_38 {dimension_numbers = #tpu.dot_dimension_numbers<[1], [0], [0], [1], [0, 0, 1, 1], [], []>} : vector<2x32xbf16>, vector<32x128xbf16>, vector<2x128xf32> -> vector<2x128xf32>
    %295 = arith.addf %293, %294 : vector<2x128xf32>
    %296 = vector.extract_strided_slice %295 {offsets = [0, 0], sizes = [2, 96], strides = [1, 1]} : vector<2x128xf32> to vector<2x96xf32>
    %297 = arith.negf %296 : vector<2x96xf32>
    %298 = math.exp %297 : vector<2x96xf32>
    %cst_39 = arith.constant 1.000000e+00 : f32
    %299 = vector.broadcast %cst_39 : f32 to vector<2x96xf32>
    %300 = arith.addf %299, %298 : vector<2x96xf32>
    %301 = arith.divf %299, %300 : vector<2x96xf32>
    %302 = vector.extract_strided_slice %295 {offsets = [0, 96], sizes = [2, 32], strides = [1, 1]} : vector<2x128xf32> to vector<2x32xf32>
    %303 = math.tanh %302 : vector<2x32xf32>
    %304 = vector.extract_strided_slice %301 {offsets = [0, 32], sizes = [2, 32], strides = [1, 1]} : vector<2x96xf32> to vector<2x32xf32>
    %305 = arith.mulf %304, %288 : vector<2x32xf32>
    %306 = vector.extract_strided_slice %301 {offsets = [0, 0], sizes = [2, 32], strides = [1, 1]} : vector<2x96xf32> to vector<2x32xf32>
    %307 = arith.mulf %306, %303 : vector<2x32xf32>
    %308 = arith.addf %305, %307 : vector<2x32xf32>
    %309 = vector.extract_strided_slice %301 {offsets = [0, 64], sizes = [2, 32], strides = [1, 1]} : vector<2x96xf32> to vector<2x32xf32>
    %310 = math.tanh %308 : vector<2x32xf32>
    %311 = arith.mulf %309, %310 : vector<2x32xf32>
    %312 = arith.truncf %311 : vector<2x32xf32> to vector<2x32xbf16>
    %313 = vector.extract_strided_slice %173 {offsets = [14, 0], sizes = [2, 128], strides = [1, 1]} : vector<16x128xf32> to vector<2x128xf32>
    %cst_40 = arith.constant dense<0.000000e+00> : vector<2x128xf32>
    %314 = tpu.matmul %312, %169, %cst_40 {dimension_numbers = #tpu.dot_dimension_numbers<[1], [0], [0], [1], [0, 0, 1, 1], [], []>} : vector<2x32xbf16>, vector<32x128xbf16>, vector<2x128xf32> -> vector<2x128xf32>
    %315 = arith.addf %313, %314 : vector<2x128xf32>
    %316 = vector.extract_strided_slice %315 {offsets = [0, 0], sizes = [2, 96], strides = [1, 1]} : vector<2x128xf32> to vector<2x96xf32>
    %317 = arith.negf %316 : vector<2x96xf32>
    %318 = math.exp %317 : vector<2x96xf32>
    %cst_41 = arith.constant 1.000000e+00 : f32
    %319 = vector.broadcast %cst_41 : f32 to vector<2x96xf32>
    %320 = arith.addf %319, %318 : vector<2x96xf32>
    %321 = arith.divf %319, %320 : vector<2x96xf32>
    %322 = vector.extract_strided_slice %315 {offsets = [0, 96], sizes = [2, 32], strides = [1, 1]} : vector<2x128xf32> to vector<2x32xf32>
    %323 = math.tanh %322 : vector<2x32xf32>
    %324 = vector.extract_strided_slice %321 {offsets = [0, 32], sizes = [2, 32], strides = [1, 1]} : vector<2x96xf32> to vector<2x32xf32>
    %325 = arith.mulf %324, %308 : vector<2x32xf32>
    %326 = vector.extract_strided_slice %321 {offsets = [0, 0], sizes = [2, 32], strides = [1, 1]} : vector<2x96xf32> to vector<2x32xf32>
    %327 = arith.mulf %326, %323 : vector<2x32xf32>
    %328 = arith.addf %325, %327 : vector<2x32xf32>
    %329 = vector.extract_strided_slice %321 {offsets = [0, 64], sizes = [2, 32], strides = [1, 1]} : vector<2x96xf32> to vector<2x32xf32>
    %330 = math.tanh %328 : vector<2x32xf32>
    %331 = arith.mulf %329, %330 : vector<2x32xf32>
    %332 = arith.truncf %331 : vector<2x32xf32> to vector<2x32xbf16>
    %333 = tpu.concatenate %192, %212, %232, %252, %272, %292, %312, %332 in 0 : vector<2x32xbf16>, vector<2x32xbf16>, vector<2x32xbf16>, vector<2x32xbf16>, vector<2x32xbf16>, vector<2x32xbf16>, vector<2x32xbf16>, vector<2x32xbf16> -> vector<16x32xbf16>
    %c112 = arith.constant 112 : index
    %c0_42 = arith.constant 0 : index
    %334 = vector.load %arg2[%c112, %c0_42] : memref<264x128xbf16, #tpu.memory_space<vmem>>, vector<32x32xbf16>
    %c144 = arith.constant 144 : index
    %c0_43 = arith.constant 0 : index
    %335 = vector.load %arg2[%c144, %c0_43] : memref<264x128xbf16, #tpu.memory_space<vmem>>, vector<32x64xbf16>
    %c176 = arith.constant 176 : index
    %c0_44 = arith.constant 0 : index
    %336 = vector.load %arg2[%c176, %c0_44] : memref<264x128xbf16, #tpu.memory_space<vmem>>, vector<32x32xbf16>
    %c256 = arith.constant 256 : index
    %c0_45 = arith.constant 0 : index
    %337 = vector.load %arg2[%c256, %c0_45] : memref<264x128xbf16, #tpu.memory_space<vmem>>, vector<8x32xbf16>
    %c2 = arith.constant 2 : index
    %c0_46 = arith.constant 0 : index
    %338 = vector.load %arg3[%c2, %c0_46] : memref<40x128xf32, #tpu.memory_space<vmem>>, vector<1x32xf32>
    %c2_47 = arith.constant 2 : index
    %c32 = arith.constant 32 : index
    %339 = vector.load %arg3[%c2_47, %c32] : memref<40x128xf32, #tpu.memory_space<vmem>>, vector<1x64xf32>
    %c2_48 = arith.constant 2 : index
    %c96 = arith.constant 96 : index
    %340 = vector.load %arg3[%c2_48, %c96] : memref<40x128xf32, #tpu.memory_space<vmem>>, vector<1x32xf32>
    %c8 = arith.constant 8 : index
    %c0_49 = arith.constant 0 : index
    %341 = vector.load %arg3[%c8, %c0_49] : memref<40x128xf32, #tpu.memory_space<vmem>>, vector<32x8xf32>
    %342 = arith.truncf %331 : vector<2x32xf32> to vector<2x32xbf16>
    %cst_50 = arith.constant dense<0.000000e+00> : vector<2x32xf32>
    %343 = tpu.matmul %342, %334, %cst_50 {dimension_numbers = #tpu.dot_dimension_numbers<[1], [0], [0], [1], [0, 0, 1, 1], [], []>} : vector<2x32xbf16>, vector<32x32xbf16>, vector<2x32xf32> -> vector<2x32xf32>
    %344 = vector.broadcast %338 : vector<1x32xf32> to vector<2x32xf32>
    %345 = arith.addf %343, %344 : vector<2x32xf32>
    %cst_51 = arith.constant dense<0.000000e+00> : vector<16x64xf32>
    %346 = tpu.matmul %333, %335, %cst_51 {dimension_numbers = #tpu.dot_dimension_numbers<[1], [0], [0], [1], [0, 0, 1, 1], [], []>} : vector<16x32xbf16>, vector<32x64xbf16>, vector<16x64xf32> -> vector<16x64xf32>
    %347 = vector.broadcast %339 : vector<1x64xf32> to vector<16x64xf32>
    %348 = arith.addf %346, %347 : vector<16x64xf32>
    %349 = vector.extract_strided_slice %348 {offsets = [0, 0], sizes = [16, 32], strides = [1, 1]} : vector<16x64xf32> to vector<16x32xf32>
    %350 = vector.extract_strided_slice %348 {offsets = [0, 32], sizes = [16, 32], strides = [1, 1]} : vector<16x64xf32> to vector<16x32xf32>
    %351 = tpu.concatenate %345, %345, %345, %345, %345, %345, %345, %345 in 0 : vector<2x32xf32>, vector<2x32xf32>, vector<2x32xf32>, vector<2x32xf32>, vector<2x32xf32>, vector<2x32xf32>, vector<2x32xf32>, vector<2x32xf32> -> vector<16x32xf32>
    %352 = arith.mulf %349, %351 : vector<16x32xf32>
    %cst_52 = arith.constant dense<0.000000e+00> : vector<16x8xf32>
    %353 = tpu.matmul %352, %341, %cst_52 {dimension_numbers = #tpu.dot_dimension_numbers<[1], [0], [0], [1], [0, 0, 1, 1], [], []>} : vector<16x32xf32>, vector<32x8xf32>, vector<16x8xf32> -> vector<16x8xf32>
    %354 = vector.shape_cast %353 : vector<16x8xf32> to vector<8x2x8xf32>
    %cst_53 = arith.constant dense<0xFF800000> : vector<2x8xf32>
    %355 = vector.multi_reduction <maximumf>, %354, %cst_53 [0] : vector<8x2x8xf32> to vector<2x8xf32>
    %356 = vector.shape_cast %355 : vector<2x8xf32> to vector<1x2x8xf32>
    %357 = vector.broadcast %356 : vector<1x2x8xf32> to vector<8x2x8xf32>
    %358 = arith.subf %354, %357 : vector<8x2x8xf32>
    %359 = math.exp %358 : vector<8x2x8xf32>
    %cst_54 = arith.constant dense<0.000000e+00> : vector<2x8xf32>
    %360 = vector.multi_reduction <add>, %359, %cst_54 [0] : vector<8x2x8xf32> to vector<2x8xf32>
    %361 = vector.shape_cast %360 : vector<2x8xf32> to vector<1x2x8xf32>
    %362 = tpu.reciprocal %361 {approx = true} : vector<1x2x8xf32> -> vector<1x2x8xf32>
    %363 = vector.broadcast %362 : vector<1x2x8xf32> to vector<8x2x8xf32>
    %364 = arith.mulf %359, %363 : vector<8x2x8xf32>
    %365 = vector.shape_cast %364 : vector<8x2x8xf32> to vector<16x8xf32>
    %366 = arith.truncf %365 : vector<16x8xf32> to vector<16x8xbf16>
    %cst_55 = arith.constant dense<0.000000e+00> : vector<16x32xf32>
    %367 = tpu.matmul %366, %337, %cst_55 {dimension_numbers = #tpu.dot_dimension_numbers<[1], [0], [0], [1], [0, 0, 1, 1], [], []>} : vector<16x8xbf16>, vector<8x32xbf16>, vector<16x32xf32> -> vector<16x32xf32>
    %368 = arith.mulf %367, %350 : vector<16x32xf32>
    %369 = vector.shape_cast %368 : vector<16x32xf32> to vector<8x2x32xf32>
    %cst_56 = arith.constant dense<0.000000e+00> : vector<2x32xf32>
    %370 = vector.multi_reduction <add>, %369, %cst_56 [0] : vector<8x2x32xf32> to vector<2x32xf32>
    %371 = arith.truncf %370 : vector<2x32xf32> to vector<2x32xbf16>
    %cst_57 = arith.constant dense<0.000000e+00> : vector<2x32xf32>
    %372 = tpu.matmul %371, %336, %cst_57 {dimension_numbers = #tpu.dot_dimension_numbers<[1], [0], [0], [1], [0, 0, 1, 1], [], []>} : vector<2x32xbf16>, vector<32x32xbf16>, vector<2x32xf32> -> vector<2x32xf32>
    %373 = vector.broadcast %340 : vector<1x32xf32> to vector<2x32xf32>
    %374 = arith.addf %372, %373 : vector<2x32xf32>
    %375 = arith.addf %331, %374 : vector<2x32xf32>
    %c3 = arith.constant 3 : index
    %c0_58 = arith.constant 0 : index
    %376 = vector.load %arg3[%c3, %c0_58] : memref<40x128xf32, #tpu.memory_space<vmem>>, vector<1x16xf32>
    %c3_59 = arith.constant 3 : index
    %c16_60 = arith.constant 16 : index
    %377 = vector.load %arg3[%c3_59, %c16_60] : memref<40x128xf32, #tpu.memory_space<vmem>>, vector<1x1xf32>
    %c208 = arith.constant 208 : index
    %c0_61 = arith.constant 0 : index
    %378 = vector.load %arg2[%c208, %c0_61] : memref<264x128xbf16, #tpu.memory_space<vmem>>, vector<32x16xbf16>
    %379 = arith.truncf %375 : vector<2x32xf32> to vector<2x32xbf16>
    %cst_62 = arith.constant dense<0.000000e+00> : vector<2x16xf32>
    %380 = tpu.matmul %379, %378, %cst_62 {dimension_numbers = #tpu.dot_dimension_numbers<[1], [0], [0], [1], [0, 0, 1, 1], [], []>} : vector<2x32xbf16>, vector<32x16xbf16>, vector<2x16xf32> -> vector<2x16xf32>
    %381 = vector.broadcast %376 : vector<1x16xf32> to vector<2x16xf32>
    %382 = arith.addf %380, %381 : vector<2x16xf32>
    %cst_63 = arith.constant 0.000000e+00 : f32
    %383 = vector.broadcast %cst_63 : f32 to vector<2x16xf32>
    %384 = arith.maximumf %382, %383 : vector<2x16xf32>
    %c240 = arith.constant 240 : index
    %c0_64 = arith.constant 0 : index
    %385 = vector.load %arg2[%c240, %c0_64] : memref<264x128xbf16, #tpu.memory_space<vmem>>, vector<16x1xbf16>
    %386 = arith.truncf %384 : vector<2x16xf32> to vector<2x16xbf16>
    %cst_65 = arith.constant dense<0.000000e+00> : vector<2x1xf32>
    %387 = tpu.matmul %386, %385, %cst_65 {dimension_numbers = #tpu.dot_dimension_numbers<[1], [0], [0], [1], [0, 0, 1, 1], [], []>} : vector<2x16xbf16>, vector<16x1xbf16>, vector<2x1xf32> -> vector<2x1xf32>
    %388 = vector.broadcast %377 : vector<1x1xf32> to vector<2x1xf32>
    %389 = arith.addf %387, %388 : vector<2x1xf32>
    %c0_66 = arith.constant 0 : index
    %c0_67 = arith.constant 0 : index
    %390 = vector.load %arg4[%c0_66, %c0_67] : memref<2x1xf32, #tpu.memory_space<vmem>>, vector<2x1xf32>
    tpu.vector_store %arg4[%c0_66, %c0_67], %389 {strides = array<i32>} : memref<2x1xf32, #tpu.memory_space<vmem>>, vector<2x1xf32>,
    return
  }
  func.func @transform_0(%arg0: i32) -> (i32, i32) {
    %c0_i32 = arith.constant 0 : i32
    %c0_i32_0 = arith.constant 0 : i32
    %c0_i32_1 = arith.constant 0 : i32
    return %c0_i32, %c0_i32_0 : i32, i32
  }
  func.func @transform_1(%arg0: i32) -> (i32, i32) {
    %c0_i32 = arith.constant 0 : i32
    %c0_i32_0 = arith.constant 0 : i32
    %c0_i32_1 = arith.constant 0 : i32
    return %c0_i32, %c0_i32_0 : i32, i32
  }
  func.func @transform_2(%arg0: i32) -> (i32, i32) {
    %c0_i32 = arith.constant 0 : i32
    %c0_i32_0 = arith.constant 0 : i32
    %c0_i32_1 = arith.constant 0 : i32
    return %c0_i32, %c0_i32_0 : i32, i32
  }
  func.func @transform_3(%arg0: i32) -> (i32, i32) {
    %c0_i32 = arith.constant 0 : i32
    %c0_i32_0 = arith.constant 0 : i32
    %c0_i32_1 = arith.constant 0 : i32
    return %c0_i32, %c0_i32_0 : i32, i32
  }
}

</mosaic_0001>

<llo_original>
// kernel: lstm_predictor_forward.1
$region0: #{lstm_predictor_forward.1}
  #allocation0 [shape = 'u32[]', space=smem, size = 0x4, offset = 0x4, fixed_abs, tag = 'smem constant byte address 0x4 - core index']
  #allocation1 [shape = 'u32[144,128]{1,0:T(1,128)}', space=vmem, size = 0x12000, scoped, tag = 'internal scratch']
  %s0 = inlined_call_operand.vmem [shape: f32[16,16], index: 0, kind: input, shape index: {}]
  %s1 = inlined_call_operand.hbm [shape: bf16[264,128], index: 1, kind: input, shape index: {}]
  %s2 = inlined_call_operand.hbm [shape: f32[40,128], index: 2, kind: input, shape index: {}]
  %s3 = inlined_call_operand.vmem [shape: f32[2,1], index: 3, kind: output, shape index: {}]
  %s4 = sld [smem:[#allocation0]]
  $region30: #{lstm_predictor_forward.1} parent=0
    _
  %s6 = ssub.s32 1, %s4
  %s7 = scalar_select 0, %s6, %s4
  $region1: #{lstm_predictor_forward.1} parent=0
    #allocation2 [shape = 'u8[67584]{0}', space=vmem, size = 0x10800, scoped, tag = 'input window, operand 1, single buffered']
    #allocation3 [shape = 's32[1]{0}', space=sflag, size = 0x4, scoped, tag = 'scoped memory for lstm_predictor_forward.1']
    #allocation4 [shape = 'u8[20480]{0}', space=vmem, size = 0x5000, scoped, tag = 'input window, operand 2, single buffered']
    #allocation5 [shape = 's32[1]{0}', space=sflag, size = 0x4, scoped, tag = 'scoped memory for lstm_predictor_forward.1']
    %8 = vsyncpa [#allocation3], 0
    %9 = vsyncpa [#allocation5], 0
    // Predicated region
    $region2: #{lstm_predictor_forward.1} parent=1 // pred_check
      _
    $region3: #{lstm_predictor_forward.1} parent=1 // pred_check_branch
      %11 = sbr.rel (0) target = $region5
    $region4: #{lstm_predictor_forward.1} parent=1 // pred_region
      _
    $region5: #{lstm_predictor_forward.1} parent=1 // pred_fallthru
      _
    // Predicated region
    $region6: #{lstm_predictor_forward.1} parent=1 // pred_check
      _
    $region7: #{lstm_predictor_forward.1} parent=1 // pred_check_branch
      %13 = sbr.rel (0) target = $region9
    $region8: #{lstm_predictor_forward.1} parent=1 // pred_region
      %s15 = ssub.s32 2112, 2112
      %16 = vsyncadd [#allocation3], %s15
      %s17 = sshll.u32 [#allocation2], 4
      %s18 = int_to_ptr.vmem [resolvable:$true] %s17
      %23 = dma.hbm_to_vmem [thread:$0]  %s1, 2112, %s18, [#allocation3], 64, 64, 4
    $region9: #{lstm_predictor_forward.1} parent=1 // pred_fallthru
      _
    // Predicated region
    $region10: #{lstm_predictor_forward.1} parent=1 // pred_check
      _
    $region11: #{lstm_predictor_forward.1} parent=1 // pred_check_branch
      %25 = sbr.rel (0) target = $region13
    $region12: #{lstm_predictor_forward.1} parent=1 // pred_region
      %s27 = ssub.s32 640, 640
      %28 = vsyncadd [#allocation5], %s27
      %s29 = sshll.u32 [#allocation4], 4
      %s30 = int_to_ptr.vmem [resolvable:$true] %s29
      %35 = dma.hbm_to_vmem [thread:$0]  %s2, 640, %s30, [#allocation5], 128, 128, 8
    $region13: #{lstm_predictor_forward.1} parent=1 // pred_fallthru
      _
    // Predicated region
    $region14: #{lstm_predictor_forward.1} parent=1 // pred_check
      _
    $region15: #{lstm_predictor_forward.1} parent=1 // pred_check_branch
      %37 = sbr.rel (0) target = $region17
    $region16: #{lstm_predictor_forward.1} parent=1 // pred_region
      %38 = dma.done [#allocation3], 2112
    $region17: #{lstm_predictor_forward.1} parent=1 // pred_fallthru
      _
    // Predicated region
    $region18: #{lstm_predictor_forward.1} parent=1 // pred_check
      _
    $region19: #{lstm_predictor_forward.1} parent=1 // pred_check_branch
      %40 = sbr.rel (0) target = $region21
    $region20: #{lstm_predictor_forward.1} parent=1 // pred_region
      %41 = dma.done [#allocation5], 640
    $region21: #{lstm_predictor_forward.1} parent=1 // pred_fallthru
      _
    %v43 = vld [vmem:[%s0] sm:$0xff]
    %v44 = vld [vmem:[%s0 + $0x8] sm:$0xff]
    %v45 = vld [vmem:[#allocation2] sm:$0xf]
    %v46 = vld [vmem:[#allocation2 + $0x4] sm:$0xf]
    %v47 = vld [vmem:[#allocation2 + $0x8] sm:$0xf]
    %v48 = vld [vmem:[#allocation2 + $0xc] sm:$0xf]
    %v49 = vld [vmem:[#allocation2 + $0x10] sm:$0xf]
    %v50 = vld [vmem:[#allocation2 + $0x14] sm:$0xf]
    %v51 = vld [vmem:[#allocation4] sm:$0x1]
    %v52 = vpack.c.bf16 %v44, %v43
    %v53 = vlaneseq
    %v54 = vshrl.u32 %v53, 7
    %v55 = vsub.s32 0, %v54
    %v56 = vrot.slane %v51, %v55
    %v59 = vunpack.c.l.b16 %v45
    %v60 = vunpack.c.l.b16 %v46
    %v61 = vpack.c.b16 %v60, %v59
    %vm63 = vcmask 130048
    %v65 = vsel %vm63, %v52, 0
    %67 = vmatprep.subr.bf16.mxu0 0
    %68 = vmatpush1.bf16.msra.mxu0 0
    %69 = vmatprep.subr.bf16.mxu0 0
    %70 = vmatpush1.bf16.msra.mxu0 0
    %71 = vmatprep.subr.bf16.mxu0 0
    %72 = vmatpush1.bf16.msra.mxu0 0
    %73 = vmatprep.subr.bf16.mxu0 0
    %74 = vmatpush1.bf16.msra.mxu0 0
    %75 = vmatprep.subr.bf16.mxu0 0
    %76 = vmatpush1.bf16.msra.mxu0 0
    %77 = vmatprep.subr.bf16.mxu0 0
    %78 = vmatpush1.bf16.msra.mxu0 0
    %79 = vmatprep.subr.bf16.mxu0 0
    %80 = vmatpush1.bf16.msra.mxu0 0
    %81 = vmatprep.subr.bf16.mxu0 0
    %82 = vmatpush1.bf16.msra.mxu0 %v61
    %83 = vmatprep.subr.bf16.mxu0 0
    %84 = vmatpush2.bf16.msra.mxu0 0
    %85 = vmatprep.subr.bf16.mxu0 0
    %86 = vmatpush2.bf16.msra.mxu0 0
    %87 = vmatprep.subr.bf16.mxu0 0
    %88 = vmatpush2.bf16.msra.mxu0 0
    %89 = vmatprep.subr.bf16.mxu0 0
    %90 = vmatpush2.bf16.msra.mxu0 0
    %91 = vmatprep.subr.bf16.mxu0 0
    %92 = vmatpush2.bf16.msra.mxu0 0
    %93 = vmatprep.subr.bf16.mxu0 0
    %94 = vmatpush2.bf16.msra.mxu0 0
    %95 = vmatprep.subr.bf16.mxu0 0
    %96 = vmatpush2.bf16.msra.mxu0 0
    %97 = vmatprep.subr.bf16.mxu0 0
    %98 = vmatpush2.bf16.msra.mxu0 0
    %99 = vmatprep.mubr.bf16.mxu0 0
    %100 = vmatmul.mubr.bf16.gmra.mxu0 %v65
    %v101 = vpop.f32.mrf.mxu0
    %v102 = vadd.f32 %v56, %v101
    %v103 = vpop.f32.mrf.mxu0
    %v104 = vpop.f32.mrf.mxu0
    %v105 = vadd.f32 %v56, %v104
    %v106 = vpop.f32.mrf.mxu0
    %107 = vdwg.mxu0
    %v108 = vxor.u32 %v102, 2147483648
    %v109 = vmul.f32 %v108, 1.442695
    %v110 = vpow.pop %v109
    %v111 = vadd.f32 %v110, 1.0
    %v112 = vrcp.pop %v111
    %v113 = vmul.f32 1.0, %v112
    %v114 = vtanh.pop %v102
    %v115 = vmul.f32 %v113, 0.0
    %117 = vrot.lane.b32.xlu0 %v114, 32
    %v118 = vpop.permute.xlu0 %117
    %v120 = vmul.f32 %v113, %v118
    %122 = vrot.lane.b32.xlu0 %v120, 32
    %v123 = vpop.permute.xlu0 %122
    %v125 = vadd.f32 %v115, %v123
    %v126 = vtanh.pop %v125
    %128 = vrot.lane.b32.xlu0 %v126, 32
    %v129 = vpop.permute.xlu0 %128
    %v131 = vmul.f32 %v113, %v129
    %v132 = vpack.c.bf16 %v131, %v131
    %134 = vrot.lane.b32.xlu0 %v132, 64
    %v135 = vpop.permute.xlu0 %134
    %v140 = vunpack.c.l.b16 %v47
    %v141 = vunpack.c.l.b16 %v48
    %v142 = vunpack.c.l.b16 %v49
    %v143 = vunpack.c.l.b16 %v50
    %v144 = vpack.c.b16 %v141, %v140
    %v145 = vpack.c.b16 %v143, %v142
    %vm148 = vcmask 261120
    %v150 = vsel %vm148, %v135, 0
    %152 = vmatprep.subr.bf16.mxu0 0
    %153 = vmatpush1.bf16.msra.mxu0 0
    %154 = vmatprep.subr.bf16.mxu0 0
    %155 = vmatpush1.bf16.msra.mxu0 0
    %156 = vmatprep.subr.bf16.mxu0 0
    %157 = vmatpush1.bf16.msra.mxu0 0
    %158 = vmatprep.subr.bf16.mxu0 0
    %159 = vmatpush1.bf16.msra.mxu0 0
    %160 = vmatprep.subr.bf16.mxu0 0
    %161 = vmatpush1.bf16.msra.mxu0 0
    %162 = vmatprep.subr.bf16.mxu0 0
    %163 = vmatpush1.bf16.msra.mxu0 0
    %164 = vmatprep.subr.bf16.mxu0 0
    %165 = vmatpush1.bf16.msra.mxu0 %v145
    %166 = vmatprep.subr.bf16.mxu0 0
    %167 = vmatpush1.bf16.msra.mxu0 %v144
    %168 = vmatprep.subr.bf16.mxu0 0
    %169 = vmatpush2.bf16.msra.mxu0 0
    %170 = vmatprep.subr.bf16.mxu0 0
    %171 = vmatpush2.bf16.msra.mxu0 0
    %172 = vmatprep.subr.bf16.mxu0 0
    %173 = vmatpush2.bf16.msra.mxu0 0
    %174 = vmatprep.subr.bf16.mxu0 0
    %175 = vmatpush2.bf16.msra.mxu0 0
    %176 = vmatprep.subr.bf16.mxu0 0
    %177 = vmatpush2.bf16.msra.mxu0 0
    %178 = vmatprep.subr.bf16.mxu0 0
    %179 = vmatpush2.bf16.msra.mxu0 0
    %180 = vmatprep.subr.bf16.mxu0 0
    %181 = vmatpush2.bf16.msra.mxu0 0
    %182 = vmatprep.subr.bf16.mxu0 0
    %183 = vmatpush2.bf16.msra.mxu0 0
    %184 = vmatprep.mubr.bf16.mxu0 0
    %185 = vmatmul.mubr.bf16.gmra.mxu0 %v150
    %v186 = vpop.f32.mrf.mxu0
    %v187 = vadd.f32 0.0, %v186
    %v188 = vpop.f32.mrf.mxu0
    %v189 = vpop.f32.mrf.mxu0
    %v190 = vpop.f32.mrf.mxu0
    %191 = vdwg.mxu0
    %v193 = vrot.slane %v187, 6
    %v195 = vadd.f32 %v102, %v193
    %v196 = vxor.u32 %v195, 2147483648
    %v197 = vmul.f32 %v196, 1.442695
    %v198 = vpow.pop %v197
    %v199 = vadd.f32 %v198, 1.0
    %v200 = vrcp.pop %v199
    %v201 = vmul.f32 1.0, %v200
    %v202 = vtanh.pop %v195
    %v204 = vrot.slane %v125, 6
    %v206 = vmul.f32 %v201, %v204
    %208 = vrot.lane.b32.xlu0 %v202, 32
    %v209 = vpop.permute.xlu0 %208
    %v211 = vmul.f32 %v201, %v209
    %213 = vrot.lane.b32.xlu0 %v211, 32
    %v214 = vpop.permute.xlu0 %213
    %v216 = vadd.f32 %v206, %v214
    %v217 = vtanh.pop %v216
    %219 = vrot.lane.b32.xlu0 %v217, 32
    %v220 = vpop.permute.xlu0 %219
    %v222 = vmul.f32 %v201, %v220
    %v223 = vpack.c.bf16 %v222, %v222
    %v225 = vrot.slane %v223, 1
    %226 = vrot.lane.b32.xlu0 %v225, 64
    %v227 = vpop.permute.xlu0 %226
    %v229 = vsel %vm148, %v227, 0
    %231 = vmatprep.subr.bf16.mxu0 0
    %232 = vmatpush1.bf16.msra.mxu0 0
    %233 = vmatprep.subr.bf16.mxu0 0
    %234 = vmatpush1.bf16.msra.mxu0 0
    %235 = vmatprep.subr.bf16.mxu0 0
    %236 = vmatpush1.bf16.msra.mxu0 0
    %237 = vmatprep.subr.bf16.mxu0 0
    %238 = vmatpush1.bf16.msra.mxu0 0
    %239 = vmatprep.subr.bf16.mxu0 0
    %240 = vmatpush1.bf16.msra.mxu0 0
    %241 = vmatprep.subr.bf16.mxu0 0
    %242 = vmatpush1.bf16.msra.mxu0 0
    %243 = vmatprep.subr.bf16.mxu0 0
    %244 = vmatpush1.bf16.msra.mxu0 %v145
    %245 = vmatprep.subr.bf16.mxu0 0
    %246 = vmatpush1.bf16.msra.mxu0 %v144
    %247 = vmatprep.subr.bf16.mxu0 0
    %248 = vmatpush2.bf16.msra.mxu0 0
    %249 = vmatprep.subr.bf16.mxu0 0
    %250 = vmatpush2.bf16.msra.mxu0 0
    %251 = vmatprep.subr.bf16.mxu0 0
    %252 = vmatpush2.bf16.msra.mxu0 0
    %253 = vmatprep.subr.bf16.mxu0 0
    %254 = vmatpush2.bf16.msra.mxu0 0
    %255 = vmatprep.subr.bf16.mxu0 0
    %256 = vmatpush2.bf16.msra.mxu0 0
    %257 = vmatprep.subr.bf16.mxu0 0
    %258 = vmatpush2.bf16.msra.mxu0 0
    %259 = vmatprep.subr.bf16.mxu0 0
    %260 = vmatpush2.bf16.msra.mxu0 0
    %261 = vmatprep.subr.bf16.mxu0 0
    %262 = vmatpush2.bf16.msra.mxu0 0
    %263 = vmatprep.mubr.bf16.mxu0 0
    %264 = vmatmul.mubr.bf16.gmra.mxu0 %v229
    %v265 = vpop.f32.mrf.mxu0
    %v266 = vadd.f32 0.0, %v265
    %v267 = vpop.f32.mrf.mxu0
    %v268 = vpop.f32.mrf.mxu0
    %v269 = vpop.f32.mrf.mxu0
    %270 = vdwg.mxu0
    %v272 = vrot.slane %v266, 4
    %v274 = vadd.f32 %v102, %v272
    %v275 = vxor.u32 %v274, 2147483648
    %v276 = vmul.f32 %v275, 1.442695
    %v277 = vpow.pop %v276
    %v278 = vadd.f32 %v277, 1.0
    %v279 = vrcp.pop %v278
    %v280 = vmul.f32 1.0, %v279
    %v281 = vtanh.pop %v274
    %v283 = vrot.slane %v216, 6
    %v285 = vmul.f32 %v280, %v283
    %287 = vrot.lane.b32.xlu0 %v281, 32
    %v288 = vpop.permute.xlu0 %287
    %v290 = vmul.f32 %v280, %v288
    %292 = vrot.lane.b32.xlu0 %v290, 32
    %v293 = vpop.permute.xlu0 %292
    %v295 = vadd.f32 %v285, %v293
    %v296 = vtanh.pop %v295
    %298 = vrot.lane.b32.xlu0 %v296, 32
    %v299 = vpop.permute.xlu0 %298
    %v301 = vmul.f32 %v280, %v299
    %v302 = vpack.c.bf16 %v301, %v301
    %v304 = vrot.slane %v302, 2
    %305 = vrot.lane.b32.xlu0 %v304, 64
    %v306 = vpop.permute.xlu0 %305
    %v308 = vsel %vm148, %v306, 0
    %310 = vmatprep.subr.bf16.mxu0 0
    %311 = vmatpush1.bf16.msra.mxu0 0
    %312 = vmatprep.subr.bf16.mxu0 0
    %313 = vmatpush1.bf16.msra.mxu0 0
    %314 = vmatprep.subr.bf16.mxu0 0
    %315 = vmatpush1.bf16.msra.mxu0 0
    %316 = vmatprep.subr.bf16.mxu0 0
    %317 = vmatpush1.bf16.msra.mxu0 0
    %318 = vmatprep.subr.bf16.mxu0 0
    %319 = vmatpush1.bf16.msra.mxu0 0
    %320 = vmatprep.subr.bf16.mxu0 0
    %321 = vmatpush1.bf16.msra.mxu0 0
    %322 = vmatprep.subr.bf16.mxu0 0
    %323 = vmatpush1.bf16.msra.mxu0 %v145
    %324 = vmatprep.subr.bf16.mxu0 0
    %325 = vmatpush1.bf16.msra.mxu0 %v144
    %326 = vmatprep.subr.bf16.mxu0 0
    %327 = vmatpush2.bf16.msra.mxu0 0
    %328 = vmatprep.subr.bf16.mxu0 0
    %329 = vmatpush2.bf16.msra.mxu0 0
    %330 = vmatprep.subr.bf16.mxu0 0
    %331 = vmatpush2.bf16.msra.mxu0 0
    %332 = vmatprep.subr.bf16.mxu0 0
    %333 = vmatpush2.bf16.msra.mxu0 0
    %334 = vmatprep.subr.bf16.mxu0 0
    %335 = vmatpush2.bf16.msra.mxu0 0
    %336 = vmatprep.subr.bf16.mxu0 0
    %337 = vmatpush2.bf16.msra.mxu0 0
    %338 = vmatprep.subr.bf16.mxu0 0
    %339 = vmatpush2.bf16.msra.mxu0 0
    %340 = vmatprep.subr.bf16.mxu0 0
    %341 = vmatpush2.bf16.msra.mxu0 0
    %342 = vmatprep.mubr.bf16.mxu0 0
    %343 = vmatmul.mubr.bf16.gmra.mxu0 %v308
    %v344 = vpop.f32.mrf.mxu0
    %v345 = vadd.f32 0.0, %v344
    %v346 = vpop.f32.mrf.mxu0
    %v347 = vpop.f32.mrf.mxu0
    %v348 = vpop.f32.mrf.mxu0
    %349 = vdwg.mxu0
    %v351 = vrot.slane %v345, 2
    %v353 = vadd.f32 %v102, %v351
    %v354 = vxor.u32 %v353, 2147483648
    %v355 = vmul.f32 %v354, 1.442695
    %v356 = vpow.pop %v355
    %v357 = vadd.f32 %v356, 1.0
    %v358 = vrcp.pop %v357
    %v359 = vmul.f32 1.0, %v358
    %v360 = vtanh.pop %v353
    %v362 = vrot.slane %v295, 6
    %v364 = vmul.f32 %v359, %v362
    %366 = vrot.lane.b32.xlu0 %v360, 32
    %v367 = vpop.permute.xlu0 %366
    %v369 = vmul.f32 %v359, %v367
    %371 = vrot.lane.b32.xlu0 %v369, 32
    %v372 = vpop.permute.xlu0 %371
    %v374 = vadd.f32 %v364, %v372
    %v375 = vtanh.pop %v374
    %377 = vrot.lane.b32.xlu0 %v375, 32
    %v378 = vpop.permute.xlu0 %377
    %v380 = vmul.f32 %v359, %v378
    %v381 = vpack.c.bf16 %v380, %v380
    %v383 = vrot.slane %v381, 3
    %384 = vrot.lane.b32.xlu0 %v383, 64
    %v385 = vpop.permute.xlu0 %384
    %v387 = vsel %vm148, %v385, 0
    %389 = vmatprep.subr.bf16.mxu0 0
    %390 = vmatpush1.bf16.msra.mxu0 0
    %391 = vmatprep.subr.bf16.mxu0 0
    %392 = vmatpush1.bf16.msra.mxu0 0
    %393 = vmatprep.subr.bf16.mxu0 0
    %394 = vmatpush1.bf16.msra.mxu0 0
    %395 = vmatprep.subr.bf16.mxu0 0
    %396 = vmatpush1.bf16.msra.mxu0 0
    %397 = vmatprep.subr.bf16.mxu0 0
    %398 = vmatpush1.bf16.msra.mxu0 0
    %399 = vmatprep.subr.bf16.mxu0 0
    %400 = vmatpush1.bf16.msra.mxu0 0
    %401 = vmatprep.subr.bf16.mxu0 0
    %402 = vmatpush1.bf16.msra.mxu0 %v145
    %403 = vmatprep.subr.bf16.mxu0 0
    %404 = vmatpush1.bf16.msra.mxu0 %v144
    %405 = vmatprep.subr.bf16.mxu0 0
    %406 = vmatpush2.bf16.msra.mxu0 0
    %407 = vmatprep.subr.bf16.mxu0 0
    %408 = vmatpush2.bf16.msra.mxu0 0
    %409 = vmatprep.subr.bf16.mxu0 0
    %410 = vmatpush2.bf16.msra.mxu0 0
    %411 = vmatprep.subr.bf16.mxu0 0
    %412 = vmatpush2.bf16.msra.mxu0 0
    %413 = vmatprep.subr.bf16.mxu0 0
    %414 = vmatpush2.bf16.msra.mxu0 0
    %415 = vmatprep.subr.bf16.mxu0 0
    %416 = vmatpush2.bf16.msra.mxu0 0
    %417 = vmatprep.subr.bf16.mxu0 0
    %418 = vmatpush2.bf16.msra.mxu0 0
    %419 = vmatprep.subr.bf16.mxu0 0
    %420 = vmatpush2.bf16.msra.mxu0 0
    %421 = vmatprep.mubr.bf16.mxu0 0
    %422 = vmatmul.mubr.bf16.gmra.mxu0 %v387
    %v423 = vpop.f32.mrf.mxu0
    %v424 = vadd.f32 0.0, %v423
    %v425 = vpop.f32.mrf.mxu0
    %v426 = vpop.f32.mrf.mxu0
    %v427 = vpop.f32.mrf.mxu0
    %428 = vdwg.mxu0
    %v429 = vadd.f32 %v105, %v424
    %v430 = vxor.u32 %v429, 2147483648
    %v431 = vmul.f32 %v430, 1.442695
    %v432 = vpow.pop %v431
    %v433 = vadd.f32 %v432, 1.0
    %v434 = vrcp.pop %v433
    %v435 = vmul.f32 1.0, %v434
    %v436 = vtanh.pop %v429
    %v438 = vrot.slane %v374, 6
    %v440 = vmul.f32 %v435, %v438
    %442 = vrot.lane.b32.xlu0 %v436, 32
    %v443 = vpop.permute.xlu0 %442
    %v445 = vmul.f32 %v435, %v443
    %447 = vrot.lane.b32.xlu0 %v445, 32
    %v448 = vpop.permute.xlu0 %447
    %v450 = vadd.f32 %v440, %v448
    %v451 = vtanh.pop %v450
    %453 = vrot.lane.b32.xlu0 %v451, 32
    %v454 = vpop.permute.xlu0 %453
    %v456 = vmul.f32 %v435, %v454
    %v457 = vpack.c.bf16 %v456, %v456
    %459 = vrot.lane.b32.xlu0 %v457, 64
    %v460 = vpop.permute.xlu0 %459
    %v462 = vsel %vm148, %v460, 0
    %464 = vmatprep.subr.bf16.mxu0 0
    %465 = vmatpush1.bf16.msra.mxu0 0
    %466 = vmatprep.subr.bf16.mxu0 0
    %467 = vmatpush1.bf16.msra.mxu0 0
    %468 = vmatprep.subr.bf16.mxu0 0
    %469 = vmatpush1.bf16.msra.mxu0 0
    %470 = vmatprep.subr.bf16.mxu0 0
    %471 = vmatpush1.bf16.msra.mxu0 0
    %472 = vmatprep.subr.bf16.mxu0 0
    %473 = vmatpush1.bf16.msra.mxu0 0
    %474 = vmatprep.subr.bf16.mxu0 0
    %475 = vmatpush1.bf16.msra.mxu0 0
    %476 = vmatprep.subr.bf16.mxu0 0
    %477 = vmatpush1.bf16.msra.mxu0 %v145
    %478 = vmatprep.subr.bf16.mxu0 0
    %479 = vmatpush1.bf16.msra.mxu0 %v144
    %480 = vmatprep.subr.bf16.mxu0 0
    %481 = vmatpush2.bf16.msra.mxu0 0
    %482 = vmatprep.subr.bf16.mxu0 0
    %483 = vmatpush2.bf16.msra.mxu0 0
    %484 = vmatprep.subr.bf16.mxu0 0
    %485 = vmatpush2.bf16.msra.mxu0 0
    %486 = vmatprep.subr.bf16.mxu0 0
    %487 = vmatpush2.bf16.msra.mxu0 0
    %488 = vmatprep.subr.bf16.mxu0 0
    %489 = vmatpush2.bf16.msra.mxu0 0
    %490 = vmatprep.subr.bf16.mxu0 0
    %491 = vmatpush2.bf16.msra.mxu0 0
    %492 = vmatprep.subr.bf16.mxu0 0
    %493 = vmatpush2.bf16.msra.mxu0 0
    %494 = vmatprep.subr.bf16.mxu0 0
    %495 = vmatpush2.bf16.msra.mxu0 0
    %496 = vmatprep.mubr.bf16.mxu0 0
    %497 = vmatmul.mubr.bf16.gmra.mxu0 %v462
    %v498 = vpop.f32.mrf.mxu0
    %v499 = vadd.f32 0.0, %v498
    %v500 = vpop.f32.mrf.mxu0
    %v501 = vpop.f32.mrf.mxu0
    %v502 = vpop.f32.mrf.mxu0
    %503 = vdwg.mxu0
    %v505 = vrot.slane %v499, 6
    %v507 = vadd.f32 %v105, %v505
    %v508 = vxor.u32 %v507, 2147483648
    %v509 = vmul.f32 %v508, 1.442695
    %v510 = vpow.pop %v509
    %v511 = vadd.f32 %v510, 1.0
    %v512 = vrcp.pop %v511
    %v513 = vmul.f32 1.0, %v512
    %v514 = vtanh.pop %v507
    %v516 = vrot.slane %v450, 6
    %v518 = vmul.f32 %v513, %v516
    %520 = vrot.lane.b32.xlu0 %v514, 32
    %v521 = vpop.permute.xlu0 %520
    %v523 = vmul.f32 %v513, %v521
    %525 = vrot.lane.b32.xlu0 %v523, 32
    %v526 = vpop.permute.xlu0 %525
    %v528 = vadd.f32 %v518, %v526
    %v529 = vtanh.pop %v528
    %531 = vrot.lane.b32.xlu0 %v529, 32
    %v532 = vpop.permute.xlu0 %531
    %v534 = vmul.f32 %v513, %v532
    %v535 = vpack.c.bf16 %v534, %v534
    %v537 = vrot.slane %v535, 1
    %538 = vrot.lane.b32.xlu0 %v537, 64
    %v539 = vpop.permute.xlu0 %538
    %v541 = vsel %vm148, %v539, 0
    %543 = vmatprep.subr.bf16.mxu0 0
    %544 = vmatpush1.bf16.msra.mxu0 0
    %545 = vmatprep.subr.bf16.mxu0 0
    %546 = vmatpush1.bf16.msra.mxu0 0
    %547 = vmatprep.subr.bf16.mxu0 0
    %548 = vmatpush1.bf16.msra.mxu0 0
    %549 = vmatprep.subr.bf16.mxu0 0
    %550 = vmatpush1.bf16.msra.mxu0 0
    %551 = vmatprep.subr.bf16.mxu0 0
    %552 = vmatpush1.bf16.msra.mxu0 0
    %553 = vmatprep.subr.bf16.mxu0 0
    %554 = vmatpush1.bf16.msra.mxu0 0
    %555 = vmatprep.subr.bf16.mxu0 0
    %556 = vmatpush1.bf16.msra.mxu0 %v145
    %557 = vmatprep.subr.bf16.mxu0 0
    %558 = vmatpush1.bf16.msra.mxu0 %v144
    %559 = vmatprep.subr.bf16.mxu0 0
    %560 = vmatpush2.bf16.msra.mxu0 0
    %561 = vmatprep.subr.bf16.mxu0 0
    %562 = vmatpush2.bf16.msra.mxu0 0
    %563 = vmatprep.subr.bf16.mxu0 0
    %564 = vmatpush2.bf16.msra.mxu0 0
    %565 = vmatprep.subr.bf16.mxu0 0
    %566 = vmatpush2.bf16.msra.mxu0 0
    %567 = vmatprep.subr.bf16.mxu0 0
    %568 = vmatpush2.bf16.msra.mxu0 0
    %569 = vmatprep.subr.bf16.mxu0 0
    %570 = vmatpush2.bf16.msra.mxu0 0
    %571 = vmatprep.subr.bf16.mxu0 0
    %572 = vmatpush2.bf16.msra.mxu0 0
    %573 = vmatprep.subr.bf16.mxu0 0
    %574 = vmatpush2.bf16.msra.mxu0 0
    %575 = vmatprep.mubr.bf16.mxu0 0
    %576 = vmatmul.mubr.bf16.gmra.mxu0 %v541
    %v577 = vpop.f32.mrf.mxu0
    %v578 = vadd.f32 0.0, %v577
    %v579 = vpop.f32.mrf.mxu0
    %v580 = vpop.f32.mrf.mxu0
    %v581 = vpop.f32.mrf.mxu0
    %582 = vdwg.mxu0
    %v584 = vrot.slane %v578, 4
    %v586 = vadd.f32 %v105, %v584
    %v587 = vxor.u32 %v586, 2147483648
    %v588 = vmul.f32 %v587, 1.442695
    %v589 = vpow.pop %v588
    %v590 = vadd.f32 %v589, 1.0
    %v591 = vrcp.pop %v590
    %v592 = vmul.f32 1.0, %v591
    %v593 = vtanh.pop %v586
    %v595 = vrot.slane %v528, 6
    %v597 = vmul.f32 %v592, %v595
    %599 = vrot.lane.b32.xlu0 %v593, 32
    %v600 = vpop.permute.xlu0 %599
    %v602 = vmul.f32 %v592, %v600
    %604 = vrot.lane.b32.xlu0 %v602, 32
    %v605 = vpop.permute.xlu0 %604
    %v607 = vadd.f32 %v597, %v605
    %v608 = vtanh.pop %v607
    %610 = vrot.lane.b32.xlu0 %v608, 32
    %v611 = vpop.permute.xlu0 %610
    %v613 = vmul.f32 %v592, %v611
    %v614 = vpack.c.bf16 %v613, %v613
    %v616 = vrot.slane %v614, 2
    %617 = vrot.lane.b32.xlu0 %v616, 64
    %v618 = vpop.permute.xlu0 %617
    %v620 = vsel %vm148, %v618, 0
    %622 = vmatprep.subr.bf16.mxu0 0
    %623 = vmatpush1.bf16.msra.mxu0 0
    %624 = vmatprep.subr.bf16.mxu0 0
    %625 = vmatpush1.bf16.msra.mxu0 0
    %626 = vmatprep.subr.bf16.mxu0 0
    %627 = vmatpush1.bf16.msra.mxu0 0
    %628 = vmatprep.subr.bf16.mxu0 0
    %629 = vmatpush1.bf16.msra.mxu0 0
    %630 = vmatprep.subr.bf16.mxu0 0
    %631 = vmatpush1.bf16.msra.mxu0 0
    %632 = vmatprep.subr.bf16.mxu0 0
    %633 = vmatpush1.bf16.msra.mxu0 0
    %634 = vmatprep.subr.bf16.mxu0 0
    %635 = vmatpush1.bf16.msra.mxu0 %v145
    %636 = vmatprep.subr.bf16.mxu0 0
    %637 = vmatpush1.bf16.msra.mxu0 %v144
    %638 = vmatprep.subr.bf16.mxu0 0
    %639 = vmatpush2.bf16.msra.mxu0 0
    %640 = vmatprep.subr.bf16.mxu0 0
    %641 = vmatpush2.bf16.msra.mxu0 0
    %642 = vmatprep.subr.bf16.mxu0 0
    %643 = vmatpush2.bf16.msra.mxu0 0
    %644 = vmatprep.subr.bf16.mxu0 0
    %645 = vmatpush2.bf16.msra.mxu0 0
    %646 = vmatprep.subr.bf16.mxu0 0
    %647 = vmatpush2.bf16.msra.mxu0 0
    %648 = vmatprep.subr.bf16.mxu0 0
    %649 = vmatpush2.bf16.msra.mxu0 0
    %650 = vmatprep.subr.bf16.mxu0 0
    %651 = vmatpush2.bf16.msra.mxu0 0
    %652 = vmatprep.subr.bf16.mxu0 0
    %653 = vmatpush2.bf16.msra.mxu0 0
    %654 = vmatprep.mubr.bf16.mxu0 0
    %655 = vmatmul.mubr.bf16.gmra.mxu0 %v620
    %v656 = vpop.f32.mrf.mxu0
    %v657 = vadd.f32 0.0, %v656
    %v658 = vpop.f32.mrf.mxu0
    %v659 = vpop.f32.mrf.mxu0
    %v660 = vpop.f32.mrf.mxu0
    %661 = vdwg.mxu0
    %v663 = vrot.slane %v657, 2
    %v665 = vadd.f32 %v105, %v663
    %v666 = vxor.u32 %v665, 2147483648
    %v667 = vmul.f32 %v666, 1.442695
    %v668 = vpow.pop %v667
    %v669 = vadd.f32 %v668, 1.0
    %v670 = vrcp.pop %v669
    %v671 = vmul.f32 1.0, %v670
    %v672 = vtanh.pop %v665
    %v674 = vrot.slane %v607, 6
    %v676 = vmul.f32 %v671, %v674
    %678 = vrot.lane.b32.xlu0 %v672, 32
    %v679 = vpop.permute.xlu0 %678
    %v681 = vmul.f32 %v671, %v679
    %683 = vrot.lane.b32.xlu0 %v681, 32
    %v684 = vpop.permute.xlu0 %683
    %v686 = vadd.f32 %v676, %v684
    %v687 = vtanh.pop %v686
    %689 = vrot.lane.b32.xlu0 %v687, 32
    %v690 = vpop.permute.xlu0 %689
    %v692 = vmul.f32 %v671, %v690
    %v693 = vpack.c.bf16 %v692, %v692
    %v694 = vrot.slane %v457, 4
    %v695 = vrot.slane %v535, 4
    %v696 = vrot.slane %v614, 4
    %v698 = vrot.slane %v693, 4
    %vm699 = vcmask 1040384
    %v702 = vsel %vm699, %v132, %v223
    %vm703 = vcmask 1041408
    %v705 = vsel %vm703, %v702, %v302
    %vm706 = vcmask 1042432
    %v708 = vsel %vm706, %v705, %v381
    %vm709 = vcmask 1043456
    %v711 = vsel %vm709, %v708, %v694
    %vm712 = vcmask 1044480
    %v714 = vsel %vm712, %v711, %v695
    %vm715 = vcmask 1045504
    %v717 = vsel %vm715, %v714, %v696
    %vm718 = vcmask 1046528
    %v720 = vsel %vm718, %v717, %v698
    %v721 = vld [vmem:[#allocation2 + $0x18] sm:$0xf]
    %v722 = vld [vmem:[#allocation2 + $0x1c] sm:$0xf]
    %v723 = vld [vmem:[#allocation2 + $0x20] sm:$0xf]
    %v724 = vld [vmem:[#allocation2 + $0x24] sm:$0xf]
    %v725 = vld [vmem:[#allocation2 + $0x28] sm:$0xf]
    %v726 = vld [vmem:[#allocation2 + $0x2c] sm:$0xf]
    %v727 = vld [vmem:[#allocation2 + $0x30] sm:$0xf]
    %v728 = vld [vmem:[#allocation2 + $0x34] sm:$0xf]
    %v729 = vld [vmem:[#allocation4 + $0x1] sm:$0x1]
    %v730 = vlaneseq
    %v731 = vshrl.u32 %v730, 7
    %v732 = vsub.s32 0, %v731
    %v733 = vrot.slane %v729, %v732
    %735 = vrot.lane.b32.xlu0 %v720, 64
    %v736 = vpop.permute.xlu0 %735
    %v741 = vunpack.c.l.b16 %v721
    %v742 = vunpack.c.l.b16 %v722
    %v743 = vunpack.c.l.b16 %v723
    %v744 = vunpack.c.l.b16 %v724
    %v745 = vpack.c.b16 %v742, %v741
    %v746 = vpack.c.b16 %v744, %v743
    %v750 = vsel %vm148, %v736, 0
    %752 = vmatprep.subr.bf16.mxu0 0
    %753 = vmatpush1.bf16.msra.mxu0 0
    %754 = vmatprep.subr.bf16.mxu0 0
    %755 = vmatpush1.bf16.msra.mxu0 0
    %756 = vmatprep.subr.bf16.mxu0 0
    %757 = vmatpush1.bf16.msra.mxu0 0
    %758 = vmatprep.subr.bf16.mxu0 0
    %759 = vmatpush1.bf16.msra.mxu0 0
    %760 = vmatprep.subr.bf16.mxu0 0
    %761 = vmatpush1.bf16.msra.mxu0 0
    %762 = vmatprep.subr.bf16.mxu0 0
    %763 = vmatpush1.bf16.msra.mxu0 0
    %764 = vmatprep.subr.bf16.mxu0 0
    %765 = vmatpush1.bf16.msra.mxu0 %v746
    %766 = vmatprep.subr.bf16.mxu0 0
    %767 = vmatpush1.bf16.msra.mxu0 %v745
    %768 = vmatprep.subr.bf16.mxu0 0
    %769 = vmatpush2.bf16.msra.mxu0 0
    %770 = vmatprep.subr.bf16.mxu0 0
    %771 = vmatpush2.bf16.msra.mxu0 0
    %772 = vmatprep.subr.bf16.mxu0 0
    %773 = vmatpush2.bf16.msra.mxu0 0
    %774 = vmatprep.subr.bf16.mxu0 0
    %775 = vmatpush2.bf16.msra.mxu0 0
    %776 = vmatprep.subr.bf16.mxu0 0
    %777 = vmatpush2.bf16.msra.mxu0 0
    %778 = vmatprep.subr.bf16.mxu0 0
    %779 = vmatpush2.bf16.msra.mxu0 0
    %780 = vmatprep.subr.bf16.mxu0 0
    %781 = vmatpush2.bf16.msra.mxu0 0
    %782 = vmatprep.subr.bf16.mxu0 0
    %783 = vmatpush2.bf16.msra.mxu0 0
    %784 = vmatprep.mubr.bf16.mxu0 0
    %785 = vmatmul.mubr.bf16.gmra.mxu0 %v750
    %v786 = vpop.f32.mrf.mxu0
    %v787 = vadd.f32 %v733, %v786
    %v788 = vpop.f32.mrf.mxu0
    %v789 = vpop.f32.mrf.mxu0
    %v790 = vadd.f32 %v733, %v789
    %v791 = vpop.f32.mrf.mxu0
    %792 = vdwg.mxu0
    %v793 = vxor.u32 %v787, 2147483648
    %v794 = vmul.f32 %v793, 1.442695
    %v795 = vpow.pop %v794
    %v796 = vadd.f32 %v795, 1.0
    %v797 = vrcp.pop %v796
    %v798 = vmul.f32 1.0, %v797
    %v799 = vtanh.pop %v787
    %v800 = vmul.f32 %v798, 0.0
    %802 = vrot.lane.b32.xlu0 %v799, 32
    %v803 = vpop.permute.xlu0 %802
    %v805 = vmul.f32 %v798, %v803
    %807 = vrot.lane.b32.xlu0 %v805, 32
    %v808 = vpop.permute.xlu0 %807
    %v810 = vadd.f32 %v800, %v808
    %v811 = vtanh.pop %v810
    %813 = vrot.lane.b32.xlu0 %v811, 32
    %v814 = vpop.permute.xlu0 %813
    %v816 = vmul.f32 %v798, %v814
    %v817 = vpack.c.bf16 %v816, %v816
    %819 = vrot.lane.b32.xlu0 %v817, 64
    %v820 = vpop.permute.xlu0 %819
    %v825 = vunpack.c.l.b16 %v725
    %v826 = vunpack.c.l.b16 %v726
    %v827 = vunpack.c.l.b16 %v727
    %v828 = vunpack.c.l.b16 %v728
    %v829 = vpack.c.b16 %v826, %v825
    %v830 = vpack.c.b16 %v828, %v827
    %v834 = vsel %vm148, %v820, 0
    %836 = vmatprep.subr.bf16.mxu0 0
    %837 = vmatpush1.bf16.msra.mxu0 0
    %838 = vmatprep.subr.bf16.mxu0 0
    %839 = vmatpush1.bf16.msra.mxu0 0
    %840 = vmatprep.subr.bf16.mxu0 0
    %841 = vmatpush1.bf16.msra.mxu0 0
    %842 = vmatprep.subr.bf16.mxu0 0
    %843 = vmatpush1.bf16.msra.mxu0 0
    %844 = vmatprep.subr.bf16.mxu0 0
    %845 = vmatpush1.bf16.msra.mxu0 0
    %846 = vmatprep.subr.bf16.mxu0 0
    %847 = vmatpush1.bf16.msra.mxu0 0
    %848 = vmatprep.subr.bf16.mxu0 0
    %849 = vmatpush1.bf16.msra.mxu0 %v830
    %850 = vmatprep.subr.bf16.mxu0 0
    %851 = vmatpush1.bf16.msra.mxu0 %v829
    %852 = vmatprep.subr.bf16.mxu0 0
    %853 = vmatpush2.bf16.msra.mxu0 0
    %854 = vmatprep.subr.bf16.mxu0 0
    %855 = vmatpush2.bf16.msra.mxu0 0
    %856 = vmatprep.subr.bf16.mxu0 0
    %857 = vmatpush2.bf16.msra.mxu0 0
    %858 = vmatprep.subr.bf16.mxu0 0
    %859 = vmatpush2.bf16.msra.mxu0 0
    %860 = vmatprep.subr.bf16.mxu0 0
    %861 = vmatpush2.bf16.msra.mxu0 0
    %862 = vmatprep.subr.bf16.mxu0 0
    %863 = vmatpush2.bf16.msra.mxu0 0
    %864 = vmatprep.subr.bf16.mxu0 0
    %865 = vmatpush2.bf16.msra.mxu0 0
    %866 = vmatprep.subr.bf16.mxu0 0
    %867 = vmatpush2.bf16.msra.mxu0 0
    %868 = vmatprep.mubr.bf16.mxu0 0
    %869 = vmatmul.mubr.bf16.gmra.mxu0 %v834
    %v870 = vpop.f32.mrf.mxu0
    %v871 = vadd.f32 0.0, %v870
    %v872 = vpop.f32.mrf.mxu0
    %v873 = vpop.f32.mrf.mxu0
    %v874 = vpop.f32.mrf.mxu0
    %875 = vdwg.mxu0
    %v877 = vrot.slane %v871, 6
    %v879 = vadd.f32 %v787, %v877
    %v880 = vxor.u32 %v879, 2147483648
    %v881 = vmul.f32 %v880, 1.442695
    %v882 = vpow.pop %v881
    %v883 = vadd.f32 %v882, 1.0
    %v884 = vrcp.pop %v883
    %v885 = vmul.f32 1.0, %v884
    %v886 = vtanh.pop %v879
    %v888 = vrot.slane %v810, 6
    %v890 = vmul.f32 %v885, %v888
    %892 = vrot.lane.b32.xlu0 %v886, 32
    %v893 = vpop.permute.xlu0 %892
    %v895 = vmul.f32 %v885, %v893
    %897 = vrot.lane.b32.xlu0 %v895, 32
    %v898 = vpop.permute.xlu0 %897
    %v900 = vadd.f32 %v890, %v898
    %v901 = vtanh.pop %v900
    %903 = vrot.lane.b32.xlu0 %v901, 32
    %v904 = vpop.permute.xlu0 %903
    %v906 = vmul.f32 %v885, %v904
    %v907 = vpack.c.bf16 %v906, %v906
    %v909 = vrot.slane %v907, 1
    %910 = vrot.lane.b32.xlu0 %v909, 64
    %v911 = vpop.permute.xlu0 %910
    %v913 = vsel %vm148, %v911, 0
    %915 = vmatprep.subr.bf16.mxu0 0
    %916 = vmatpush1.bf16.msra.mxu0 0
    %917 = vmatprep.subr.bf16.mxu0 0
    %918 = vmatpush1.bf16.msra.mxu0 0
    %919 = vmatprep.subr.bf16.mxu0 0
    %920 = vmatpush1.bf16.msra.mxu0 0
    %921 = vmatprep.subr.bf16.mxu0 0
    %922 = vmatpush1.bf16.msra.mxu0 0
    %923 = vmatprep.subr.bf16.mxu0 0
    %924 = vmatpush1.bf16.msra.mxu0 0
    %925 = vmatprep.subr.bf16.mxu0 0
    %926 = vmatpush1.bf16.msra.mxu0 0
    %927 = vmatprep.subr.bf16.mxu0 0
    %928 = vmatpush1.bf16.msra.mxu0 %v830
    %929 = vmatprep.subr.bf16.mxu0 0
    %930 = vmatpush1.bf16.msra.mxu0 %v829
    %931 = vmatprep.subr.bf16.mxu0 0
    %932 = vmatpush2.bf16.msra.mxu0 0
    %933 = vmatprep.subr.bf16.mxu0 0
    %934 = vmatpush2.bf16.msra.mxu0 0
    %935 = vmatprep.subr.bf16.mxu0 0
    %936 = vmatpush2.bf16.msra.mxu0 0
    %937 = vmatprep.subr.bf16.mxu0 0
    %938 = vmatpush2.bf16.msra.mxu0 0
    %939 = vmatprep.subr.bf16.mxu0 0
    %940 = vmatpush2.bf16.msra.mxu0 0
    %941 = vmatprep.subr.bf16.mxu0 0
    %942 = vmatpush2.bf16.msra.mxu0 0
    %943 = vmatprep.subr.bf16.mxu0 0
    %944 = vmatpush2.bf16.msra.mxu0 0
    %945 = vmatprep.subr.bf16.mxu0 0
    %946 = vmatpush2.bf16.msra.mxu0 0
    %947 = vmatprep.mubr.bf16.mxu0 0
    %948 = vmatmul.mubr.bf16.gmra.mxu0 %v913
    %v949 = vpop.f32.mrf.mxu0
    %v950 = vadd.f32 0.0, %v949
    %v951 = vpop.f32.mrf.mxu0
    %v952 = vpop.f32.mrf.mxu0
    %v953 = vpop.f32.mrf.mxu0
    %954 = vdwg.mxu0
    %v956 = vrot.slane %v950, 4
    %v958 = vadd.f32 %v787, %v956
    %v959 = vxor.u32 %v958, 2147483648
    %v960 = vmul.f32 %v959, 1.442695
    %v961 = vpow.pop %v960
    %v962 = vadd.f32 %v961, 1.0
    %v963 = vrcp.pop %v962
    %v964 = vmul.f32 1.0, %v963
    %v965 = vtanh.pop %v958
    %v967 = vrot.slane %v900, 6
    %v969 = vmul.f32 %v964, %v967
    %971 = vrot.lane.b32.xlu0 %v965, 32
    %v972 = vpop.permute.xlu0 %971
    %v974 = vmul.f32 %v964, %v972
    %976 = vrot.lane.b32.xlu0 %v974, 32
    %v977 = vpop.permute.xlu0 %976
    %v979 = vadd.f32 %v969, %v977
    %v980 = vtanh.pop %v979
    %982 = vrot.lane.b32.xlu0 %v980, 32
    %v983 = vpop.permute.xlu0 %982
    %v985 = vmul.f32 %v964, %v983
    %v986 = vpack.c.bf16 %v985, %v985
    %v988 = vrot.slane %v986, 2
    %989 = vrot.lane.b32.xlu0 %v988, 64
    %v990 = vpop.permute.xlu0 %989
    %v992 = vsel %vm148, %v990, 0
    %994 = vmatprep.subr.bf16.mxu0 0
    %995 = vmatpush1.bf16.msra.mxu0 0
    %996 = vmatprep.subr.bf16.mxu0 0
    %997 = vmatpush1.bf16.msra.mxu0 0
    %998 = vmatprep.subr.bf16.mxu0 0
    %999 = vmatpush1.bf16.msra.mxu0 0
    %1000 = vmatprep.subr.bf16.mxu0 0
    %1001 = vmatpush1.bf16.msra.mxu0 0
    %1002 = vmatprep.subr.bf16.mxu0 0
    %1003 = vmatpush1.bf16.msra.mxu0 0
    %1004 = vmatprep.subr.bf16.mxu0 0
    %1005 = vmatpush1.bf16.msra.mxu0 0
    %1006 = vmatprep.subr.bf16.mxu0 0
    %1007 = vmatpush1.bf16.msra.mxu0 %v830
    %1008 = vmatprep.subr.bf16.mxu0 0
    %1009 = vmatpush1.bf16.msra.mxu0 %v829
    %1010 = vmatprep.subr.bf16.mxu0 0
    %1011 = vmatpush2.bf16.msra.mxu0 0
    %1012 = vmatprep.subr.bf16.mxu0 0
    %1013 = vmatpush2.bf16.msra.mxu0 0
    %1014 = vmatprep.subr.bf16.mxu0 0
    %1015 = vmatpush2.bf16.msra.mxu0 0
    %1016 = vmatprep.subr.bf16.mxu0 0
    %1017 = vmatpush2.bf16.msra.mxu0 0
    %1018 = vmatprep.subr.bf16.mxu0 0
    %1019 = vmatpush2.bf16.msra.mxu0 0
    %1020 = vmatprep.subr.bf16.mxu0 0
    %1021 = vmatpush2.bf16.msra.mxu0 0
    %1022 = vmatprep.subr.bf16.mxu0 0
    %1023 = vmatpush2.bf16.msra.mxu0 0
    %1024 = vmatprep.subr.bf16.mxu0 0
    %1025 = vmatpush2.bf16.msra.mxu0 0
    %1026 = vmatprep.mubr.bf16.mxu0 0
    %1027 = vmatmul.mubr.bf16.gmra.mxu0 %v992
    %v1028 = vpop.f32.mrf.mxu0
    %v1029 = vadd.f32 0.0, %v1028
    %v1030 = vpop.f32.mrf.mxu0
    %v1031 = vpop.f32.mrf.mxu0
    %v1032 = vpop.f32.mrf.mxu0
    %1033 = vdwg.mxu0
    %v1035 = vrot.slane %v1029, 2
    %v1037 = vadd.f32 %v787, %v1035
    %v1038 = vxor.u32 %v1037, 2147483648
    %v1039 = vmul.f32 %v1038, 1.442695
    %v1040 = vpow.pop %v1039
    %v1041 = vadd.f32 %v1040, 1.0
    %v1042 = vrcp.pop %v1041
    %v1043 = vmul.f32 1.0, %v1042
    %v1044 = vtanh.pop %v1037
    %v1046 = vrot.slane %v979, 6
    %v1048 = vmul.f32 %v1043, %v1046
    %1050 = vrot.lane.b32.xlu0 %v1044, 32
    %v1051 = vpop.permute.xlu0 %1050
    %v1053 = vmul.f32 %v1043, %v1051
    %1055 = vrot.lane.b32.xlu0 %v1053, 32
    %v1056 = vpop.permute.xlu0 %1055
    %v1058 = vadd.f32 %v1048, %v1056
    %v1059 = vtanh.pop %v1058
    %1061 = vrot.lane.b32.xlu0 %v1059, 32
    %v1062 = vpop.permute.xlu0 %1061
    %v1064 = vmul.f32 %v1043, %v1062
    %v1065 = vpack.c.bf16 %v1064, %v1064
    %v1067 = vrot.slane %v1065, 3
    %1068 = vrot.lane.b32.xlu0 %v1067, 64
    %v1069 = vpop.permute.xlu0 %1068
    %v1071 = vsel %vm148, %v1069, 0
    %1073 = vmatprep.subr.bf16.mxu0 0
    %1074 = vmatpush1.bf16.msra.mxu0 0
    %1075 = vmatprep.subr.bf16.mxu0 0
    %1076 = vmatpush1.bf16.msra.mxu0 0
    %1077 = vmatprep.subr.bf16.mxu0 0
    %1078 = vmatpush1.bf16.msra.mxu0 0
    %1079 = vmatprep.subr.bf16.mxu0 0
    %1080 = vmatpush1.bf16.msra.mxu0 0
    %1081 = vmatprep.subr.bf16.mxu0 0
    %1082 = vmatpush1.bf16.msra.mxu0 0
    %1083 = vmatprep.subr.bf16.mxu0 0
    %1084 = vmatpush1.bf16.msra.mxu0 0
    %1085 = vmatprep.subr.bf16.mxu0 0
    %1086 = vmatpush1.bf16.msra.mxu0 %v830
    %1087 = vmatprep.subr.bf16.mxu0 0
    %1088 = vmatpush1.bf16.msra.mxu0 %v829
    %1089 = vmatprep.subr.bf16.mxu0 0
    %1090 = vmatpush2.bf16.msra.mxu0 0
    %1091 = vmatprep.subr.bf16.mxu0 0
    %1092 = vmatpush2.bf16.msra.mxu0 0
    %1093 = vmatprep.subr.bf16.mxu0 0
    %1094 = vmatpush2.bf16.msra.mxu0 0
    %1095 = vmatprep.subr.bf16.mxu0 0
    %1096 = vmatpush2.bf16.msra.mxu0 0
    %1097 = vmatprep.subr.bf16.mxu0 0
    %1098 = vmatpush2.bf16.msra.mxu0 0
    %1099 = vmatprep.subr.bf16.mxu0 0
    %1100 = vmatpush2.bf16.msra.mxu0 0
    %1101 = vmatprep.subr.bf16.mxu0 0
    %1102 = vmatpush2.bf16.msra.mxu0 0
    %1103 = vmatprep.subr.bf16.mxu0 0
    %1104 = vmatpush2.bf16.msra.mxu0 0
    %1105 = vmatprep.mubr.bf16.mxu0 0
    %1106 = vmatmul.mubr.bf16.gmra.mxu0 %v1071
    %v1107 = vpop.f32.mrf.mxu0
    %v1108 = vadd.f32 0.0, %v1107
    %v1109 = vpop.f32.mrf.mxu0
    %v1110 = vpop.f32.mrf.mxu0
    %v1111 = vpop.f32.mrf.mxu0
    %1112 = vdwg.mxu0
    %v1113 = vadd.f32 %v790, %v1108
    %v1114 = vxor.u32 %v1113, 2147483648
    %v1115 = vmul.f32 %v1114, 1.442695
    %v1116 = vpow.pop %v1115
    %v1117 = vadd.f32 %v1116, 1.0
    %v1118 = vrcp.pop %v1117
    %v1119 = vmul.f32 1.0, %v1118
    %v1120 = vtanh.pop %v1113
    %v1122 = vrot.slane %v1058, 6
    %v1124 = vmul.f32 %v1119, %v1122
    %1126 = vrot.lane.b32.xlu0 %v1120, 32
    %v1127 = vpop.permute.xlu0 %1126
    %v1129 = vmul.f32 %v1119, %v1127
    %1131 = vrot.lane.b32.xlu0 %v1129, 32
    %v1132 = vpop.permute.xlu0 %1131
    %v1134 = vadd.f32 %v1124, %v1132
    %v1135 = vtanh.pop %v1134
    %1137 = vrot.lane.b32.xlu0 %v1135, 32
    %v1138 = vpop.permute.xlu0 %1137
    %v1140 = vmul.f32 %v1119, %v1138
    %v1141 = vpack.c.bf16 %v1140, %v1140
    %1143 = vrot.lane.b32.xlu0 %v1141, 64
    %v1144 = vpop.permute.xlu0 %1143
    %v1146 = vsel %vm148, %v1144, 0
    %1148 = vmatprep.subr.bf16.mxu0 0
    %1149 = vmatpush1.bf16.msra.mxu0 0
    %1150 = vmatprep.subr.bf16.mxu0 0
    %1151 = vmatpush1.bf16.msra.mxu0 0
    %1152 = vmatprep.subr.bf16.mxu0 0
    %1153 = vmatpush1.bf16.msra.mxu0 0
    %1154 = vmatprep.subr.bf16.mxu0 0
    %1155 = vmatpush1.bf16.msra.mxu0 0
    %1156 = vmatprep.subr.bf16.mxu0 0
    %1157 = vmatpush1.bf16.msra.mxu0 0
    %1158 = vmatprep.subr.bf16.mxu0 0
    %1159 = vmatpush1.bf16.msra.mxu0 0
    %1160 = vmatprep.subr.bf16.mxu0 0
    %1161 = vmatpush1.bf16.msra.mxu0 %v830
    %1162 = vmatprep.subr.bf16.mxu0 0
    %1163 = vmatpush1.bf16.msra.mxu0 %v829
    %1164 = vmatprep.subr.bf16.mxu0 0
    %1165 = vmatpush2.bf16.msra.mxu0 0
    %1166 = vmatprep.subr.bf16.mxu0 0
    %1167 = vmatpush2.bf16.msra.mxu0 0
    %1168 = vmatprep.subr.bf16.mxu0 0
    %1169 = vmatpush2.bf16.msra.mxu0 0
    %1170 = vmatprep.subr.bf16.mxu0 0
    %1171 = vmatpush2.bf16.msra.mxu0 0
    %1172 = vmatprep.subr.bf16.mxu0 0
    %1173 = vmatpush2.bf16.msra.mxu0 0
    %1174 = vmatprep.subr.bf16.mxu0 0
    %1175 = vmatpush2.bf16.msra.mxu0 0
    %1176 = vmatprep.subr.bf16.mxu0 0
    %1177 = vmatpush2.bf16.msra.mxu0 0
    %1178 = vmatprep.subr.bf16.mxu0 0
    %1179 = vmatpush2.bf16.msra.mxu0 0
    %1180 = vmatprep.mubr.bf16.mxu0 0
    %1181 = vmatmul.mubr.bf16.gmra.mxu0 %v1146
    %v1182 = vpop.f32.mrf.mxu0
    %v1183 = vadd.f32 0.0, %v1182
    %v1184 = vpop.f32.mrf.mxu0
    %v1185 = vpop.f32.mrf.mxu0
    %v1186 = vpop.f32.mrf.mxu0
    %1187 = vdwg.mxu0
    %v1189 = vrot.slane %v1183, 6
    %v1191 = vadd.f32 %v790, %v1189
    %v1192 = vxor.u32 %v1191, 2147483648
    %v1193 = vmul.f32 %v1192, 1.442695
    %v1194 = vpow.pop %v1193
    %v1195 = vadd.f32 %v1194, 1.0
    %v1196 = vrcp.pop %v1195
    %v1197 = vmul.f32 1.0, %v1196
    %v1198 = vtanh.pop %v1191
    %v1200 = vrot.slane %v1134, 6
    %v1202 = vmul.f32 %v1197, %v1200
    %1204 = vrot.lane.b32.xlu0 %v1198, 32
    %v1205 = vpop.permute.xlu0 %1204
    %v1207 = vmul.f32 %v1197, %v1205
    %1209 = vrot.lane.b32.xlu0 %v1207, 32
    %v1210 = vpop.permute.xlu0 %1209
    %v1212 = vadd.f32 %v1202, %v1210
    %v1213 = vtanh.pop %v1212
    %1215 = vrot.lane.b32.xlu0 %v1213, 32
    %v1216 = vpop.permute.xlu0 %1215
    %v1218 = vmul.f32 %v1197, %v1216
    %v1219 = vpack.c.bf16 %v1218, %v1218
    %v1221 = vrot.slane %v1219, 1
    %1222 = vrot.lane.b32.xlu0 %v1221, 64
    %v1223 = vpop.permute.xlu0 %1222
    %v1225 = vsel %vm148, %v1223, 0
    %1227 = vmatprep.subr.bf16.mxu0 0
    %1228 = vmatpush1.bf16.msra.mxu0 0
    %1229 = vmatprep.subr.bf16.mxu0 0
    %1230 = vmatpush1.bf16.msra.mxu0 0
    %1231 = vmatprep.subr.bf16.mxu0 0
    %1232 = vmatpush1.bf16.msra.mxu0 0
    %1233 = vmatprep.subr.bf16.mxu0 0
    %1234 = vmatpush1.bf16.msra.mxu0 0
    %1235 = vmatprep.subr.bf16.mxu0 0
    %1236 = vmatpush1.bf16.msra.mxu0 0
    %1237 = vmatprep.subr.bf16.mxu0 0
    %1238 = vmatpush1.bf16.msra.mxu0 0
    %1239 = vmatprep.subr.bf16.mxu0 0
    %1240 = vmatpush1.bf16.msra.mxu0 %v830
    %1241 = vmatprep.subr.bf16.mxu0 0
    %1242 = vmatpush1.bf16.msra.mxu0 %v829
    %1243 = vmatprep.subr.bf16.mxu0 0
    %1244 = vmatpush2.bf16.msra.mxu0 0
    %1245 = vmatprep.subr.bf16.mxu0 0
    %1246 = vmatpush2.bf16.msra.mxu0 0
    %1247 = vmatprep.subr.bf16.mxu0 0
    %1248 = vmatpush2.bf16.msra.mxu0 0
    %1249 = vmatprep.subr.bf16.mxu0 0
    %1250 = vmatpush2.bf16.msra.mxu0 0
    %1251 = vmatprep.subr.bf16.mxu0 0
    %1252 = vmatpush2.bf16.msra.mxu0 0
    %1253 = vmatprep.subr.bf16.mxu0 0
    %1254 = vmatpush2.bf16.msra.mxu0 0
    %1255 = vmatprep.subr.bf16.mxu0 0
    %1256 = vmatpush2.bf16.msra.mxu0 0
    %1257 = vmatprep.subr.bf16.mxu0 0
    %1258 = vmatpush2.bf16.msra.mxu0 0
    %1259 = vmatprep.mubr.bf16.mxu0 0
    %1260 = vmatmul.mubr.bf16.gmra.mxu0 %v1225
    %v1261 = vpop.f32.mrf.mxu0
    %v1262 = vadd.f32 0.0, %v1261
    %v1263 = vpop.f32.mrf.mxu0
    %v1264 = vpop.f32.mrf.mxu0
    %v1265 = vpop.f32.mrf.mxu0
    %1266 = vdwg.mxu0
    %v1268 = vrot.slane %v1262, 4
    %v1270 = vadd.f32 %v790, %v1268
    %v1271 = vxor.u32 %v1270, 2147483648
    %v1272 = vmul.f32 %v1271, 1.442695
    %v1273 = vpow.pop %v1272
    %v1274 = vadd.f32 %v1273, 1.0
    %v1275 = vrcp.pop %v1274
    %v1276 = vmul.f32 1.0, %v1275
    %v1277 = vtanh.pop %v1270
    %v1279 = vrot.slane %v1212, 6
    %v1281 = vmul.f32 %v1276, %v1279
    %1283 = vrot.lane.b32.xlu0 %v1277, 32
    %v1284 = vpop.permute.xlu0 %1283
    %v1286 = vmul.f32 %v1276, %v1284
    %1288 = vrot.lane.b32.xlu0 %v1286, 32
    %v1289 = vpop.permute.xlu0 %1288
    %v1291 = vadd.f32 %v1281, %v1289
    %v1292 = vtanh.pop %v1291
    %1294 = vrot.lane.b32.xlu0 %v1292, 32
    %v1295 = vpop.permute.xlu0 %1294
    %v1297 = vmul.f32 %v1276, %v1295
    %v1298 = vpack.c.bf16 %v1297, %v1297
    %v1300 = vrot.slane %v1298, 2
    %1301 = vrot.lane.b32.xlu0 %v1300, 64
    %v1302 = vpop.permute.xlu0 %1301
    %v1304 = vsel %vm148, %v1302, 0
    %1306 = vmatprep.subr.bf16.mxu0 0
    %1307 = vmatpush1.bf16.msra.mxu0 0
    %1308 = vmatprep.subr.bf16.mxu0 0
    %1309 = vmatpush1.bf16.msra.mxu0 0
    %1310 = vmatprep.subr.bf16.mxu0 0
    %1311 = vmatpush1.bf16.msra.mxu0 0
    %1312 = vmatprep.subr.bf16.mxu0 0
    %1313 = vmatpush1.bf16.msra.mxu0 0
    %1314 = vmatprep.subr.bf16.mxu0 0
    %1315 = vmatpush1.bf16.msra.mxu0 0
    %1316 = vmatprep.subr.bf16.mxu0 0
    %1317 = vmatpush1.bf16.msra.mxu0 0
    %1318 = vmatprep.subr.bf16.mxu0 0
    %1319 = vmatpush1.bf16.msra.mxu0 %v830
    %1320 = vmatprep.subr.bf16.mxu0 0
    %1321 = vmatpush1.bf16.msra.mxu0 %v829
    %1322 = vmatprep.subr.bf16.mxu0 0
    %1323 = vmatpush2.bf16.msra.mxu0 0
    %1324 = vmatprep.subr.bf16.mxu0 0
    %1325 = vmatpush2.bf16.msra.mxu0 0
    %1326 = vmatprep.subr.bf16.mxu0 0
    %1327 = vmatpush2.bf16.msra.mxu0 0
    %1328 = vmatprep.subr.bf16.mxu0 0
    %1329 = vmatpush2.bf16.msra.mxu0 0
    %1330 = vmatprep.subr.bf16.mxu0 0
    %1331 = vmatpush2.bf16.msra.mxu0 0
    %1332 = vmatprep.subr.bf16.mxu0 0
    %1333 = vmatpush2.bf16.msra.mxu0 0
    %1334 = vmatprep.subr.bf16.mxu0 0
    %1335 = vmatpush2.bf16.msra.mxu0 0
    %1336 = vmatprep.subr.bf16.mxu0 0
    %1337 = vmatpush2.bf16.msra.mxu0 0
    %1338 = vmatprep.mubr.bf16.mxu0 0
    %1339 = vmatmul.mubr.bf16.gmra.mxu0 %v1304
    %v1340 = vpop.f32.mrf.mxu0
    %v1341 = vadd.f32 0.0, %v1340
    %v1342 = vpop.f32.mrf.mxu0
    %v1343 = vpop.f32.mrf.mxu0
    %v1344 = vpop.f32.mrf.mxu0
    %1345 = vdwg.mxu0
    %v1347 = vrot.slane %v1341, 2
    %v1349 = vadd.f32 %v790, %v1347
    %v1350 = vxor.u32 %v1349, 2147483648
    %v1351 = vmul.f32 %v1350, 1.442695
    %v1352 = vpow.pop %v1351
    %v1353 = vadd.f32 %v1352, 1.0
    %v1354 = vrcp.pop %v1353
    %v1355 = vmul.f32 1.0, %v1354
    %v1356 = vtanh.pop %v1349
    %v1358 = vrot.slane %v1291, 6
    %v1360 = vmul.f32 %v1355, %v1358
    %1362 = vrot.lane.b32.xlu0 %v1356, 32
    %v1363 = vpop.permute.xlu0 %1362
    %v1365 = vmul.f32 %v1355, %v1363
    %1367 = vrot.lane.b32.xlu0 %v1365, 32
    %v1368 = vpop.permute.xlu0 %1367
    %v1370 = vadd.f32 %v1360, %v1368
    %v1371 = vtanh.pop %v1370
    %1373 = vrot.lane.b32.xlu0 %v1371, 32
    %v1374 = vpop.permute.xlu0 %1373
    %v1376 = vmul.f32 %v1355, %v1374
    %v1377 = vpack.c.bf16 %v1376, %v1376
    %v1378 = vrot.slane %v1141, 4
    %v1379 = vrot.slane %v1219, 4
    %v1380 = vrot.slane %v1298, 4
    %v1382 = vrot.slane %v1377, 4
    %v1385 = vsel %vm699, %v817, %v907
    %v1387 = vsel %vm703, %v1385, %v986
    %v1389 = vsel %vm706, %v1387, %v1065
    %v1391 = vsel %vm709, %v1389, %v1378
    %v1393 = vsel %vm712, %v1391, %v1379
    %v1395 = vsel %vm715, %v1393, %v1380
    %v1397 = vsel %vm718, %v1395, %v1382
    %v1398 = vld [vmem:[#allocation2 + $0x38] sm:$0xf]
    %v1399 = vld [vmem:[#allocation2 + $0x3c] sm:$0xf]
    %v1400 = vld [vmem:[#allocation2 + $0x40] sm:$0xf]
    %v1401 = vld [vmem:[#allocation2 + $0x44] sm:$0xf]
    %v1402 = vld [vmem:[#allocation2 + $0x48] sm:$0xf]
    %v1403 = vld [vmem:[#allocation2 + $0x4c] sm:$0xf]
    %v1404 = vld [vmem:[#allocation2 + $0x50] sm:$0xf]
    %v1405 = vld [vmem:[#allocation2 + $0x54] sm:$0xf]
    %v1406 = vld [vmem:[#allocation2 + $0x58] sm:$0xf]
    %v1407 = vld [vmem:[#allocation2 + $0x5c] sm:$0xf]
    %v1408 = vld [vmem:[#allocation2 + $0x60] sm:$0xf]
    %v1409 = vld [vmem:[#allocation2 + $0x64] sm:$0xf]
    %v1410 = vld [vmem:[#allocation2 + $0x80] sm:$0xf]
    %v1411 = vld [vmem:[#allocation4 + $0x2] sm:$0x1]
    %v1412 = vld [vmem:[#allocation4 + $0x8] sm:$0xff]
    %v1413 = vld [vmem:[#allocation4 + $0x10] sm:$0xff]
    %v1414 = vld [vmem:[#allocation4 + $0x18] sm:$0xff]
    %v1415 = vld [vmem:[#allocation4 + $0x20] sm:$0xff]
    %v1416 = vlaneseq
    %v1417 = vshrl.u32 %v1416, 7
    %v1418 = vsub.s32 0, %v1417
    %v1419 = vrot.slane %v1411, %v1418
    %v1420 = vrot.slane %v1377, 3
    %1421 = vrot.lane.b32.xlu0 %v1420, 64
    %v1422 = vpop.permute.xlu0 %1421
    %v1427 = vunpack.c.l.b16 %v1398
    %v1428 = vunpack.c.l.b16 %v1399
    %v1429 = vunpack.c.l.b16 %v1400
    %v1430 = vunpack.c.l.b16 %v1401
    %v1431 = vpack.c.b16 %v1428, %v1427
    %v1432 = vpack.c.b16 %v1430, %v1429
    %v1436 = vsel %vm148, %v1422, 0
    %1438 = vmatprep.subr.bf16.mxu0 0
    %1439 = vmatpush1.bf16.msra.mxu0 0
    %1440 = vmatprep.subr.bf16.mxu0 0
    %1441 = vmatpush1.bf16.msra.mxu0 0
    %1442 = vmatprep.subr.bf16.mxu0 0
    %1443 = vmatpush1.bf16.msra.mxu0 0
    %1444 = vmatprep.subr.bf16.mxu0 0
    %1445 = vmatpush1.bf16.msra.mxu0 0
    %1446 = vmatprep.subr.bf16.mxu0 0
    %1447 = vmatpush1.bf16.msra.mxu0 0
    %1448 = vmatprep.subr.bf16.mxu0 0
    %1449 = vmatpush1.bf16.msra.mxu0 0
    %1450 = vmatprep.subr.bf16.mxu0 0
    %1451 = vmatpush1.bf16.msra.mxu0 %v1432
    %1452 = vmatprep.subr.bf16.mxu0 0
    %1453 = vmatpush1.bf16.msra.mxu0 %v1431
    %1454 = vmatprep.subr.bf16.mxu0 0
    %1455 = vmatpush2.bf16.msra.mxu0 0
    %1456 = vmatprep.subr.bf16.mxu0 0
    %1457 = vmatpush2.bf16.msra.mxu0 0
    %1458 = vmatprep.subr.bf16.mxu0 0
    %1459 = vmatpush2.bf16.msra.mxu0 0
    %1460 = vmatprep.subr.bf16.mxu0 0
    %1461 = vmatpush2.bf16.msra.mxu0 0
    %1462 = vmatprep.subr.bf16.mxu0 0
    %1463 = vmatpush2.bf16.msra.mxu0 0
    %1464 = vmatprep.subr.bf16.mxu0 0
    %1465 = vmatpush2.bf16.msra.mxu0 0
    %1466 = vmatprep.subr.bf16.mxu0 0
    %1467 = vmatpush2.bf16.msra.mxu0 0
    %1468 = vmatprep.subr.bf16.mxu0 0
    %1469 = vmatpush2.bf16.msra.mxu0 0
    %1470 = vmatprep.mubr.bf16.mxu0 0
    %1471 = vmatmul.mubr.bf16.gmra.mxu0 %v1436
    %v1472 = vpop.f32.mrf.mxu0
    %v1473 = vadd.f32 %v1419, %v1472
    %v1474 = vpop.f32.mrf.mxu0
    %v1475 = vpop.f32.mrf.mxu0
    %v1476 = vpop.f32.mrf.mxu0
    %1477 = vdwg.mxu0
    %1479 = vrot.lane.b32.xlu0 %v1397, 64
    %v1480 = vpop.permute.xlu0 %1479
    %v1485 = vunpack.c.l.b16 %v1402
    %v1486 = vunpack.c.l.b16 %v1403
    %v1487 = vunpack.c.l.b16 %v1404
    %v1488 = vunpack.c.l.b16 %v1405
    %v1489 = vpack.c.b16 %v1486, %v1485
    %v1490 = vpack.c.b16 %v1488, %v1487
    %1494 = vrot.lane.b32.xlu0 %v1419, 96
    %v1495 = vpop.permute.xlu0 %1494
    %v1498 = vsel %vm148, %v1480, 0
    %1500 = vmatprep.subr.bf16.mxu0 0
    %1501 = vmatpush1.bf16.msra.mxu0 0
    %1502 = vmatprep.subr.bf16.mxu0 0
    %1503 = vmatpush1.bf16.msra.mxu0 0
    %1504 = vmatprep.subr.bf16.mxu0 0
    %1505 = vmatpush1.bf16.msra.mxu0 0
    %1506 = vmatprep.subr.bf16.mxu0 0
    %1507 = vmatpush1.bf16.msra.mxu0 0
    %1508 = vmatprep.subr.bf16.mxu0 0
    %1509 = vmatpush1.bf16.msra.mxu0 0
    %1510 = vmatprep.subr.bf16.mxu0 0
    %1511 = vmatpush1.bf16.msra.mxu0 0
    %1512 = vmatprep.subr.bf16.mxu0 0
    %1513 = vmatpush1.bf16.msra.mxu0 %v1490
    %1514 = vmatprep.subr.bf16.mxu0 0
    %1515 = vmatpush1.bf16.msra.mxu0 %v1489
    %1516 = vmatprep.subr.bf16.mxu0 0
    %1517 = vmatpush2.bf16.msra.mxu0 0
    %1518 = vmatprep.subr.bf16.mxu0 0
    %1519 = vmatpush2.bf16.msra.mxu0 0
    %1520 = vmatprep.subr.bf16.mxu0 0
    %1521 = vmatpush2.bf16.msra.mxu0 0
    %1522 = vmatprep.subr.bf16.mxu0 0
    %1523 = vmatpush2.bf16.msra.mxu0 0
    %1524 = vmatprep.subr.bf16.mxu0 0
    %1525 = vmatpush2.bf16.msra.mxu0 0
    %1526 = vmatprep.subr.bf16.mxu0 0
    %1527 = vmatpush2.bf16.msra.mxu0 0
    %1528 = vmatprep.subr.bf16.mxu0 0
    %1529 = vmatpush2.bf16.msra.mxu0 0
    %1530 = vmatprep.subr.bf16.mxu0 0
    %1531 = vmatpush2.bf16.msra.mxu0 0
    %1532 = vmatprep.mubr.bf16.mxu0 0
    %1533 = vmatmul.mubr.bf16.gmra.mxu0 %v1498
    %v1534 = vpop.f32.mrf.mxu0
    %v1535 = vadd.f32 %v1495, %v1534
    %v1536 = vpop.f32.mrf.mxu0
    %v1537 = vpop.f32.mrf.mxu0
    %v1538 = vadd.f32 %v1495, %v1537
    %v1539 = vpop.f32.mrf.mxu0
    %1540 = vdwg.mxu0
    %v1542 = vrot.slane %v1473, 6
    %v1544 = vrot.slane %v1473, 4
    %v1546 = vrot.slane %v1473, 2
    %v1548 = vsel %vm703, %v1473, %v1542
    %v1549 = vsel %vm709, %v1548, %v1544
    %v1550 = vsel %vm715, %v1549, %v1546
    %v1551 = vmul.f32 %v1535, %v1550
    %v1552 = vmul.f32 %v1538, %v1550
    %v1554 = vsel %vm148, %v1551, 0
    %v1557 = vsel %vm148, %v1552, 0
    %1559 = vmatprep.subr.mxu0 0.0
    %1560 = vmatpush1.msra.mxu0 0.0
    %1561 = vmatprep.subr.mxu0 0.0
    %1562 = vmatpush1.msra.mxu0 0.0
    %1563 = vmatprep.subr.mxu0 0.0
    %1564 = vmatpush1.msra.mxu0 0.0
    %1565 = vmatprep.subr.mxu0 0.0
    %1566 = vmatpush1.msra.mxu0 0.0
    %1567 = vmatprep.subr.mxu0 0.0
    %1568 = vmatpush1.msra.mxu0 0.0
    %1569 = vmatprep.subr.mxu0 0.0
    %1570 = vmatpush1.msra.mxu0 0.0
    %1571 = vmatprep.subr.mxu0 0.0
    %1572 = vmatpush1.msra.mxu0 0.0
    %1573 = vmatprep.subr.mxu0 0.0
    %1574 = vmatpush1.msra.mxu0 0.0
    %1575 = vmatprep.subr.mxu0 0.0
    %1576 = vmatpush1.msra.mxu0 0.0
    %1577 = vmatprep.subr.mxu0 0.0
    %1578 = vmatpush1.msra.mxu0 0.0
    %1579 = vmatprep.subr.mxu0 0.0
    %1580 = vmatpush1.msra.mxu0 0.0
    %1581 = vmatprep.subr.mxu0 0.0
    %1582 = vmatpush1.msra.mxu0 0.0
    %1583 = vmatprep.subr.mxu0 0.0
    %1584 = vmatpush1.msra.mxu0 %v1415
    %1585 = vmatprep.subr.mxu0 0.0
    %1586 = vmatpush1.msra.mxu0 %v1414
    %1587 = vmatprep.subr.mxu0 0.0
    %1588 = vmatpush1.msra.mxu0 %v1413
    %1589 = vmatprep.subr.mxu0 0.0
    %1590 = vmatpush1.msra.mxu0 %v1412
    %1591 = vmatprep.subr.mxu0 0.0
    %1592 = vmatpush2.msra.mxu0 0.0
    %1593 = vmatprep.subr.mxu0 0.0
    %1594 = vmatpush2.msra.mxu0 0.0
    %1595 = vmatprep.subr.mxu0 0.0
    %1596 = vmatpush2.msra.mxu0 0.0
    %1597 = vmatprep.subr.mxu0 0.0
    %1598 = vmatpush2.msra.mxu0 0.0
    %1599 = vmatprep.subr.mxu0 0.0
    %1600 = vmatpush2.msra.mxu0 0.0
    %1601 = vmatprep.subr.mxu0 0.0
    %1602 = vmatpush2.msra.mxu0 0.0
    %1603 = vmatprep.subr.mxu0 0.0
    %1604 = vmatpush2.msra.mxu0 0.0
    %1605 = vmatprep.subr.mxu0 0.0
    %1606 = vmatpush2.msra.mxu0 0.0
    %1607 = vmatprep.subr.mxu0 0.0
    %1608 = vmatpush2.msra.mxu0 0.0
    %1609 = vmatprep.subr.mxu0 0.0
    %1610 = vmatpush2.msra.mxu0 0.0
    %1611 = vmatprep.subr.mxu0 0.0
    %1612 = vmatpush2.msra.mxu0 0.0
    %1613 = vmatprep.subr.mxu0 0.0
    %1614 = vmatpush2.msra.mxu0 0.0
    %1615 = vmatprep.subr.mxu0 0.0
    %1616 = vmatpush2.msra.mxu0 0.0
    %1617 = vmatprep.subr.mxu0 0.0
    %1618 = vmatpush2.msra.mxu0 0.0
    %1619 = vmatprep.subr.mxu0 0.0
    %1620 = vmatpush2.msra.mxu0 0.0
    %1621 = vmatprep.subr.mxu0 0.0
    %1622 = vmatpush2.msra.mxu0 0.0
    %1623 = vmatprep.mubr.f32.mxu0 0.0
    %1624 = vmatmul.mubr.f32.gmra.mxu0 %v1554
    %v1625 = vpop.f32.mrf.mxu0
    %v1626 = vadd.f32 0.0, %v1625
    %v1627 = vpop.f32.mrf.mxu0
    %1628 = vmatprep.mubr.f32.mxu0 0.0
    %1629 = vmatmul.mubr.f32.gmra.mxu0 %v1557
    %v1630 = vpop.f32.mrf.mxu0
    %v1631 = vadd.f32 0.0, %v1630
    %v1632 = vpop.f32.mrf.mxu0
    %1633 = vdwg.mxu0
    %v1636 = vcombine.high %v1626, %v1626
    %v1638 = vunpack.c.l.s4 1983009808
    %v1639 = vunpack.c.0.s8 %v1638
    %v1640 = vlaneseq
    %v1641 = vshrl.u32 %v1640, 7
    %v1642 = vsub.s32 %v1639, %v1641
    %v1643 = vrot.slane %v1626, %v1642
    %v1645 = vunpack.c.l.s4 1983009808
    %v1646 = vunpack.c.0.s8 %v1645
    %v1647 = vlaneseq
    %v1648 = vshrl.u32 %v1647, 7
    %v1649 = vsub.s32 %v1646, %v1648
    %v1650 = vrot.slane %v1636, %v1649
    %v1651 = vcombine.high %v1643, %v1643
    %v1652 = vcombine.high %v1650, %v1650
    %v1653 = vcombine.high %v1631, %v1631
    %v1655 = vunpack.c.l.s4 1983009808
    %v1656 = vunpack.c.0.s8 %v1655
    %v1657 = vlaneseq
    %v1658 = vshrl.u32 %v1657, 7
    %v1659 = vsub.s32 %v1656, %v1658
    %v1660 = vrot.slane %v1631, %v1659
    %v1662 = vunpack.c.l.s4 1983009808
    %v1663 = vunpack.c.0.s8 %v1662
    %v1664 = vlaneseq
    %v1665 = vshrl.u32 %v1664, 7
    %v1666 = vsub.s32 %v1663, %v1665
    %v1667 = vrot.slane %v1653, %v1666
    %v1668 = vcombine.high %v1660, %v1660
    %v1669 = vcombine.high %v1667, %v1667
    %vm1678 = vcmask 58368
    %v1679 = vsel %vm1678, %v1643, -inf
    %v1680 = vsel %vm1678, %v1651, -inf
    %v1681 = vsel %vm1678, %v1650, -inf
    %v1682 = vsel %vm1678, %v1652, -inf
    %v1683 = vsel %vm1678, %v1660, -inf
    %v1684 = vmax.f32 %v1679, %v1683
    %v1685 = vsel %vm1678, %v1668, -inf
    %v1686 = vmax.f32 %v1680, %v1685
    %v1687 = vsel %vm1678, %v1667, -inf
    %v1688 = vmax.f32 %v1681, %v1687
    %v1689 = vsel %vm1678, %v1669, -inf
    %v1690 = vmax.f32 %v1682, %v1689
    %v1691 = vmax.f32 %v1684, %v1686
    %v1692 = vmax.f32 %v1688, %v1690
    %v1693 = vmax.f32 %v1691, %v1692
    %v1694 = vsub.f32 %v1643, %v1693
    %v1695 = vsub.f32 %v1651, %v1693
    %v1696 = vsub.f32 %v1650, %v1693
    %v1697 = vsub.f32 %v1652, %v1693
    %v1698 = vsub.f32 %v1660, %v1693
    %v1699 = vsub.f32 %v1668, %v1693
    %v1700 = vsub.f32 %v1667, %v1693
    %v1701 = vsub.f32 %v1669, %v1693
    %v1702 = vmul.f32 %v1694, 1.442695
    %v1703 = vpow.pop %v1702
    %v1704 = vmul.f32 %v1695, 1.442695
    %v1705 = vpow.pop %v1704
    %v1706 = vmul.f32 %v1696, 1.442695
    %v1707 = vpow.pop %v1706
    %v1708 = vmul.f32 %v1697, 1.442695
    %v1709 = vpow.pop %v1708
    %v1710 = vmul.f32 %v1698, 1.442695
    %v1711 = vpow.pop %v1710
    %v1712 = vmul.f32 %v1699, 1.442695
    %v1713 = vpow.pop %v1712
    %v1714 = vmul.f32 %v1700, 1.442695
    %v1715 = vpow.pop %v1714
    %v1716 = vmul.f32 %v1701, 1.442695
    %v1717 = vpow.pop %v1716
    %v1718 = vsel %vm1678, %v1703, 0.0
    %v1719 = vsel %vm1678, %v1705, 0.0
    %v1720 = vadd.f32 %v1718, %v1719
    %v1721 = vsel %vm1678, %v1707, 0.0
    %v1722 = vadd.f32 %v1720, %v1721
    %v1723 = vsel %vm1678, %v1709, 0.0
    %v1724 = vadd.f32 %v1722, %v1723
    %v1725 = vsel %vm1678, %v1711, 0.0
    %v1726 = vadd.f32 %v1724, %v1725
    %v1727 = vsel %vm1678, %v1713, 0.0
    %v1728 = vadd.f32 %v1726, %v1727
    %v1729 = vsel %vm1678, %v1715, 0.0
    %v1730 = vadd.f32 %v1728, %v1729
    %v1731 = vsel %vm1678, %v1717, 0.0
    %v1732 = vadd.f32 %v1730, %v1731
    %v1733 = vrcp.pop %v1732
    %v1734 = vmul.f32 %v1703, %v1733
    %v1735 = vmul.f32 %v1705, %v1733
    %v1736 = vmul.f32 %v1707, %v1733
    %v1737 = vmul.f32 %v1709, %v1733
    %v1738 = vmul.f32 %v1711, %v1733
    %v1739 = vmul.f32 %v1713, %v1733
    %v1740 = vmul.f32 %v1715, %v1733
    %v1741 = vmul.f32 %v1717, %v1733
    %v1750 = vcombine.low %v1734, %v1735
    %v1751 = vcombine.low %v1736, %v1737
    %v1753 = vunpack.c.l.s4 1983009808
    %v1754 = vunpack.c.0.s8 %v1753
    %v1755 = vlaneseq
    %v1756 = vshrl.u32 %v1755, 7
    %v1757 = vsub.s32 %v1754, %v1756
    %v1758 = vrot.slane %v1750, %v1757
    %v1760 = vunpack.c.l.s4 1983009808
    %v1761 = vunpack.c.0.s8 %v1760
    %v1762 = vlaneseq
    %v1763 = vshrl.u32 %v1762, 7
    %v1764 = vsub.s32 %v1761, %v1763
    %v1765 = vrot.slane %v1751, %v1764
    %v1766 = vcombine.low %v1758, %v1765
    %v1767 = vcombine.low %v1738, %v1739
    %v1768 = vcombine.low %v1740, %v1741
    %v1770 = vunpack.c.l.s4 1983009808
    %v1771 = vunpack.c.0.s8 %v1770
    %v1772 = vlaneseq
    %v1773 = vshrl.u32 %v1772, 7
    %v1774 = vsub.s32 %v1771, %v1773
    %v1775 = vrot.slane %v1767, %v1774
    %v1777 = vunpack.c.l.s4 1983009808
    %v1778 = vunpack.c.0.s8 %v1777
    %v1779 = vlaneseq
    %v1780 = vshrl.u32 %v1779, 7
    %v1781 = vsub.s32 %v1778, %v1780
    %v1782 = vrot.slane %v1768, %v1781
    %v1783 = vcombine.low %v1775, %v1782
    %v1786 = vpack.c.bf16 %v1783, %v1766
    %vm1787 = vcmask 64512
    %v1789 = vsel %vm1787, %v1786, 0
    %v1792 = vsel %vm709, %v1410, 0
    %1794 = vmatprep.subr.bf16.mxu0 0
    %1795 = vmatpush1.bf16.msra.mxu0 0
    %1796 = vmatprep.subr.bf16.mxu0 0
    %1797 = vmatpush1.bf16.msra.mxu0 0
    %1798 = vmatprep.subr.bf16.mxu0 0
    %1799 = vmatpush1.bf16.msra.mxu0 0
    %1800 = vmatprep.subr.bf16.mxu0 0
    %1801 = vmatpush1.bf16.msra.mxu0 0
    %1802 = vmatprep.subr.bf16.mxu0 0
    %1803 = vmatpush1.bf16.msra.mxu0 0
    %1804 = vmatprep.subr.bf16.mxu0 0
    %1805 = vmatpush1.bf16.msra.mxu0 0
    %1806 = vmatprep.subr.bf16.mxu0 0
    %1807 = vmatpush1.bf16.msra.mxu0 0
    %1808 = vmatprep.subr.bf16.mxu0 0
    %1809 = vmatpush1.bf16.msra.mxu0 %v1792
    %1810 = vmatprep.subr.bf16.mxu0 0
    %1811 = vmatpush2.bf16.msra.mxu0 0
    %1812 = vmatprep.subr.bf16.mxu0 0
    %1813 = vmatpush2.bf16.msra.mxu0 0
    %1814 = vmatprep.subr.bf16.mxu0 0
    %1815 = vmatpush2.bf16.msra.mxu0 0
    %1816 = vmatprep.subr.bf16.mxu0 0
    %1817 = vmatpush2.bf16.msra.mxu0 0
    %1818 = vmatprep.subr.bf16.mxu0 0
    %1819 = vmatpush2.bf16.msra.mxu0 0
    %1820 = vmatprep.subr.bf16.mxu0 0
    %1821 = vmatpush2.bf16.msra.mxu0 0
    %1822 = vmatprep.subr.bf16.mxu0 0
    %1823 = vmatpush2.bf16.msra.mxu0 0
    %1824 = vmatprep.subr.bf16.mxu0 0
    %1825 = vmatpush2.bf16.msra.mxu0 0
    %1826 = vmatprep.mubr.bf16.mxu0 0
    %1827 = vmatmul.mubr.bf16.gmra.mxu0 %v1789
    %v1828 = vpop.f32.mrf.mxu0
    %v1829 = vadd.f32 0.0, %v1828
    %v1830 = vpop.f32.mrf.mxu0
    %v1831 = vpop.f32.mrf.mxu0
    %v1832 = vadd.f32 0.0, %v1831
    %v1833 = vpop.f32.mrf.mxu0
    %1834 = vdwg.mxu0
    %1837 = vrot.lane.b32.xlu0 %v1535, 96
    %v1838 = vpop.permute.xlu0 %1837
    %1839 = vrot.lane.b32.xlu0 %v1538, 96
    %v1840 = vpop.permute.xlu0 %1839
    %v1843 = vmul.f32 %v1829, %v1838
    %v1844 = vmul.f32 %v1832, %v1840
    %v1847 = vcombine.high %v1843, %v1843
    %v1849 = vunpack.c.l.s4 1983009808
    %v1850 = vunpack.c.0.s8 %v1849
    %v1851 = vlaneseq
    %v1852 = vshrl.u32 %v1851, 7
    %v1853 = vsub.s32 %v1850, %v1852
    %v1854 = vrot.slane %v1843, %v1853
    %v1856 = vunpack.c.l.s4 1983009808
    %v1857 = vunpack.c.0.s8 %v1856
    %v1858 = vlaneseq
    %v1859 = vshrl.u32 %v1858, 7
    %v1860 = vsub.s32 %v1857, %v1859
    %v1861 = vrot.slane %v1847, %v1860
    %v1862 = vcombine.high %v1854, %v1854
    %v1863 = vcombine.high %v1861, %v1861
    %v1864 = vcombine.high %v1844, %v1844
    %v1866 = vunpack.c.l.s4 1983009808
    %v1867 = vunpack.c.0.s8 %v1866
    %v1868 = vlaneseq
    %v1869 = vshrl.u32 %v1868, 7
    %v1870 = vsub.s32 %v1867, %v1869
    %v1871 = vrot.slane %v1844, %v1870
    %v1873 = vunpack.c.l.s4 1983009808
    %v1874 = vunpack.c.0.s8 %v1873
    %v1875 = vlaneseq
    %v1876 = vshrl.u32 %v1875, 7
    %v1877 = vsub.s32 %v1874, %v1876
    %v1878 = vrot.slane %v1864, %v1877
    %v1879 = vcombine.high %v1871, %v1871
    %v1880 = vcombine.high %v1878, %v1878
    %vm1889 = vcmask 254976
    %v1890 = vsel %vm1889, %v1854, 0.0
    %v1891 = vsel %vm1889, %v1862, 0.0
    %v1892 = vadd.f32 %v1890, %v1891
    %v1893 = vsel %vm1889, %v1861, 0.0
    %v1894 = vadd.f32 %v1892, %v1893
    %v1895 = vsel %vm1889, %v1863, 0.0
    %v1896 = vadd.f32 %v1894, %v1895
    %v1897 = vsel %vm1889, %v1871, 0.0
    %v1898 = vadd.f32 %v1896, %v1897
    %v1899 = vsel %vm1889, %v1879, 0.0
    %v1900 = vadd.f32 %v1898, %v1899
    %v1901 = vsel %vm1889, %v1878, 0.0
    %v1902 = vadd.f32 %v1900, %v1901
    %v1903 = vsel %vm1889, %v1880, 0.0
    %v1904 = vadd.f32 %v1902, %v1903
    %v1905 = vpack.c.bf16 %v1904, %v1904
    %v1910 = vunpack.c.l.b16 %v1406
    %v1911 = vunpack.c.l.b16 %v1407
    %v1912 = vunpack.c.l.b16 %v1408
    %v1913 = vunpack.c.l.b16 %v1409
    %v1914 = vpack.c.b16 %v1911, %v1910
    %v1915 = vpack.c.b16 %v1913, %v1912
    %1918 = vrot.lane.b32.xlu0 %v1419, 32
    %v1919 = vpop.permute.xlu0 %1918
    %v1922 = vsel %vm148, %v1905, 0
    %1924 = vmatprep.subr.bf16.mxu0 0
    %1925 = vmatpush1.bf16.msra.mxu0 0
    %1926 = vmatprep.subr.bf16.mxu0 0
    %1927 = vmatpush1.bf16.msra.mxu0 0
    %1928 = vmatprep.subr.bf16.mxu0 0
    %1929 = vmatpush1.bf16.msra.mxu0 0
    %1930 = vmatprep.subr.bf16.mxu0 0
    %1931 = vmatpush1.bf16.msra.mxu0 0
    %1932 = vmatprep.subr.bf16.mxu0 0
    %1933 = vmatpush1.bf16.msra.mxu0 0
    %1934 = vmatprep.subr.bf16.mxu0 0
    %1935 = vmatpush1.bf16.msra.mxu0 0
    %1936 = vmatprep.subr.bf16.mxu0 0
    %1937 = vmatpush1.bf16.msra.mxu0 %v1915
    %1938 = vmatprep.subr.bf16.mxu0 0
    %1939 = vmatpush1.bf16.msra.mxu0 %v1914
    %1940 = vmatprep.subr.bf16.mxu0 0
    %1941 = vmatpush2.bf16.msra.mxu0 0
    %1942 = vmatprep.subr.bf16.mxu0 0
    %1943 = vmatpush2.bf16.msra.mxu0 0
    %1944 = vmatprep.subr.bf16.mxu0 0
    %1945 = vmatpush2.bf16.msra.mxu0 0
    %1946 = vmatprep.subr.bf16.mxu0 0
    %1947 = vmatpush2.bf16.msra.mxu0 0
    %1948 = vmatprep.subr.bf16.mxu0 0
    %1949 = vmatpush2.bf16.msra.mxu0 0
    %1950 = vmatprep.subr.bf16.mxu0 0
    %1951 = vmatpush2.bf16.msra.mxu0 0
    %1952 = vmatprep.subr.bf16.mxu0 0
    %1953 = vmatpush2.bf16.msra.mxu0 0
    %1954 = vmatprep.subr.bf16.mxu0 0
    %1955 = vmatpush2.bf16.msra.mxu0 0
    %1956 = vmatprep.mubr.bf16.mxu0 0
    %1957 = vmatmul.mubr.bf16.gmra.mxu0 %v1922
    %v1958 = vpop.f32.mrf.mxu0
    %v1959 = vadd.f32 %v1919, %v1958
    %v1960 = vpop.f32.mrf.mxu0
    %v1961 = vpop.f32.mrf.mxu0
    %v1962 = vpop.f32.mrf.mxu0
    %1963 = vdwg.mxu0
    %v1965 = vrot.slane %v1959, 2
    %1966 = vrot.lane.b32.xlu0 %v1965, 64
    %v1967 = vpop.permute.xlu0 %1966
    %v1969 = vadd.f32 %v1376, %v1967
    %v1970 = vld [vmem:[#allocation4 + $0x3] sm:$0x1]
    %v1971 = vld [vmem:[#allocation2 + $0x68] sm:$0xf]
    %v1972 = vld [vmem:[#allocation2 + $0x6c] sm:$0xf]
    %v1973 = vld [vmem:[#allocation2 + $0x70] sm:$0xf]
    %v1974 = vld [vmem:[#allocation2 + $0x74] sm:$0xf]
    %v1975 = vpack.c.bf16 %v1969, %v1969
    %v1976 = vlaneseq
    %v1977 = vshrl.u32 %v1976, 7
    %v1978 = vsub.s32 0, %v1977
    %v1979 = vrot.slane %v1970, %v1978
    %v1981 = vrot.slane %v1975, 3
    %1982 = vrot.lane.b32.xlu0 %v1981, 64
    %v1983 = vpop.permute.xlu0 %1982
    %v1988 = vunpack.c.l.b16 %v1971
    %v1989 = vunpack.c.l.b16 %v1972
    %v1990 = vunpack.c.l.b16 %v1973
    %v1991 = vunpack.c.l.b16 %v1974
    %v1992 = vpack.c.b16 %v1989, %v1988
    %v1993 = vpack.c.b16 %v1991, %v1990
    %v1997 = vsel %vm148, %v1983, 0
    %1999 = vmatprep.subr.bf16.mxu0 0
    %2000 = vmatpush1.bf16.msra.mxu0 0
    %2001 = vmatprep.subr.bf16.mxu0 0
    %2002 = vmatpush1.bf16.msra.mxu0 0
    %2003 = vmatprep.subr.bf16.mxu0 0
    %2004 = vmatpush1.bf16.msra.mxu0 0
    %2005 = vmatprep.subr.bf16.mxu0 0
    %2006 = vmatpush1.bf16.msra.mxu0 0
    %2007 = vmatprep.subr.bf16.mxu0 0
    %2008 = vmatpush1.bf16.msra.mxu0 0
    %2009 = vmatprep.subr.bf16.mxu0 0
    %2010 = vmatpush1.bf16.msra.mxu0 0
    %2011 = vmatprep.subr.bf16.mxu0 0
    %2012 = vmatpush1.bf16.msra.mxu0 %v1993
    %2013 = vmatprep.subr.bf16.mxu0 0
    %2014 = vmatpush1.bf16.msra.mxu0 %v1992
    %2015 = vmatprep.subr.bf16.mxu0 0
    %2016 = vmatpush2.bf16.msra.mxu0 0
    %2017 = vmatprep.subr.bf16.mxu0 0
    %2018 = vmatpush2.bf16.msra.mxu0 0
    %2019 = vmatprep.subr.bf16.mxu0 0
    %2020 = vmatpush2.bf16.msra.mxu0 0
    %2021 = vmatprep.subr.bf16.mxu0 0
    %2022 = vmatpush2.bf16.msra.mxu0 0
    %2023 = vmatprep.subr.bf16.mxu0 0
    %2024 = vmatpush2.bf16.msra.mxu0 0
    %2025 = vmatprep.subr.bf16.mxu0 0
    %2026 = vmatpush2.bf16.msra.mxu0 0
    %2027 = vmatprep.subr.bf16.mxu0 0
    %2028 = vmatpush2.bf16.msra.mxu0 0
    %2029 = vmatprep.subr.bf16.mxu0 0
    %2030 = vmatpush2.bf16.msra.mxu0 0
    %2031 = vmatprep.mubr.bf16.mxu0 0
    %2032 = vmatmul.mubr.bf16.gmra.mxu0 %v1997
    %v2033 = vpop.f32.mrf.mxu0
    %v2034 = vadd.f32 %v1979, %v2033
    %v2035 = vpop.f32.mrf.mxu0
    %v2036 = vpop.f32.mrf.mxu0
    %v2037 = vpop.f32.mrf.mxu0
    %2038 = vdwg.mxu0
    %v2039 = vmax.f32 %v2034, 0.0
    %v2040 = vld [vmem:[#allocation2 + $0x78] sm:$0xf]
    %v2041 = vld [vmem:[#allocation2 + $0x7c] sm:$0xf]
    %v2042 = vpack.c.bf16 %v2039, %v2039
    %v2045 = vunpack.c.l.b16 %v2040
    %v2046 = vunpack.c.l.b16 %v2041
    %v2047 = vpack.c.b16 %v2046, %v2045
    %2050 = vrot.lane.b32.xlu0 %v1979, 112
    %v2051 = vpop.permute.xlu0 %2050
    %v2054 = vsel %vm63, %v2042, 0
    %2056 = vmatprep.subr.bf16.mxu0 0
    %2057 = vmatpush1.bf16.msra.mxu0 0
    %2058 = vmatprep.subr.bf16.mxu0 0
    %2059 = vmatpush1.bf16.msra.mxu0 0
    %2060 = vmatprep.subr.bf16.mxu0 0
    %2061 = vmatpush1.bf16.msra.mxu0 0
    %2062 = vmatprep.subr.bf16.mxu0 0
    %2063 = vmatpush1.bf16.msra.mxu0 0
    %2064 = vmatprep.subr.bf16.mxu0 0
    %2065 = vmatpush1.bf16.msra.mxu0 0
    %2066 = vmatprep.subr.bf16.mxu0 0
    %2067 = vmatpush1.bf16.msra.mxu0 0
    %2068 = vmatprep.subr.bf16.mxu0 0
    %2069 = vmatpush1.bf16.msra.mxu0 0
    %2070 = vmatprep.subr.bf16.mxu0 0
    %2071 = vmatpush1.bf16.msra.mxu0 %v2047
    %2072 = vmatprep.subr.bf16.mxu0 0
    %2073 = vmatpush2.bf16.msra.mxu0 0
    %2074 = vmatprep.subr.bf16.mxu0 0
    %2075 = vmatpush2.bf16.msra.mxu0 0
    %2076 = vmatprep.subr.bf16.mxu0 0
    %2077 = vmatpush2.bf16.msra.mxu0 0
    %2078 = vmatprep.subr.bf16.mxu0 0
    %2079 = vmatpush2.bf16.msra.mxu0 0
    %2080 = vmatprep.subr.bf16.mxu0 0
    %2081 = vmatpush2.bf16.msra.mxu0 0
    %2082 = vmatprep.subr.bf16.mxu0 0
    %2083 = vmatpush2.bf16.msra.mxu0 0
    %2084 = vmatprep.subr.bf16.mxu0 0
    %2085 = vmatpush2.bf16.msra.mxu0 0
    %2086 = vmatprep.subr.bf16.mxu0 0
    %2087 = vmatpush2.bf16.msra.mxu0 0
    %2088 = vmatprep.mubr.bf16.mxu0 0
    %2089 = vmatmul.mubr.bf16.gmra.mxu0 %v2054
    %v2090 = vpop.f32.mrf.mxu0
    %v2091 = vadd.f32 %v2051, %v2090
    %v2092 = vpop.f32.mrf.mxu0
    %v2093 = vpop.f32.mrf.mxu0
    %v2094 = vpop.f32.mrf.mxu0
    %2095 = vdwg.mxu0
    %vm2096 = vcmask 1024
    %2097 = vst.msk [vmem:[%s3] sm:$0x3] %vm2096, %v2091
    // Predicated region
    $region22: #{lstm_predictor_forward.1} parent=1 // pred_check
      _
    $region23: #{lstm_predictor_forward.1} parent=1 // pred_check_branch
      %2099 = sbr.rel (0) target = $region25
    $region24: #{lstm_predictor_forward.1} parent=1 // pred_region
      _
    $region25: #{lstm_predictor_forward.1} parent=1 // pred_fallthru
      _
    // Predicated region
    $region26: #{lstm_predictor_forward.1} parent=1 // pred_check
      _
    $region27: #{lstm_predictor_forward.1} parent=1 // pred_check_branch
      %2101 = sbr.rel (0) target = $region29
    $region28: #{lstm_predictor_forward.1} parent=1 // pred_region
      _
    $region29: #{lstm_predictor_forward.1} parent=1 // pred_fallthru
      _
    %2102 = vsyncpa [#allocation3], 1
    %2103 = vsyncpa [#allocation5], 1

</llo_original>
